<compile_context>
chip_gen: v7x
topology: tpu7x:2x2x1
jax: 0.10.0
libtpu: 0.0.40
codegen_flags: <defaults>
</compile_context>

<pallas_src>
import jax
import jax.numpy as jnp
from jax import lax
from jax.experimental import pallas as pl
from jax.experimental.pallas import tpu as pltpu

INPUT_SIZE = 50
HIDDEN = 5
FC1 = 64
OUT = 2
H2 = 2 * HIDDEN          # fused hidden width [h_fwd | h_bwd]
GATES = 8 * HIDDEN       # fused gate width  [i_f,i_b,f_f,f_b,g_f,g_b,o_f,o_b]

# ---- packed weight slab layout (rows 8-aligned, 128 lanes wide) ----
ROW_WHH0 = 0     # (H2, GATES)
ROW_WIH1 = 16    # (H2, GATES)
ROW_WHH1 = 32    # (H2, GATES)
ROW_B1 = 48      # (1, GATES)
ROW_WFC1 = 56    # (H2, FC1)
ROW_BFC1 = 72    # (1, FC1)
ROW_WFC2 = 80    # (FC1, OUT)
ROW_BFC2 = 144   # (1, OUT)
SLAB_ROWS = 152
SLAB_COLS = 128


# ----------------------------------------------------------------------------
# Weight packing helpers (run ONCE at init, not in the per-call jit path)
# ----------------------------------------------------------------------------
def _interleave_cols(a, b):
    """Interleave two [..., 4H] gate blocks (PyTorch order i,f,g,o) into the
    fused layout [i_f,i_b,f_f,f_b,g_f,g_b,o_f,o_b] of width 8H."""
    sh = a.shape[:-1]
    a4 = a.reshape(sh + (4, HIDDEN))
    b4 = b.reshape(sh + (4, HIDDEN))
    return jnp.stack([a4, b4], axis=-2).reshape(sh + (GATES,))


def _block_hh(w_f, w_b):
    """Block-diagonal recurrent weight (2H, 8H): h_fwd rows feed only forward
    gate columns, h_bwd rows feed only backward gate columns."""
    z = jnp.zeros_like(w_f)
    top = _interleave_cols(w_f, z)
    bot = _interleave_cols(z, w_b)
    return jnp.concatenate([top, bot], axis=0)


def _gate_scale_row():
    """0.5 on the sigmoid (i/f/o) gate columns, 1.0 on the tanh (g) columns.
    Folding this pre-scale into every pre-activation contribution lets the
    kernel use a single tanh per cell: sigmoid(x) = 0.5*tanh(x/2) + 0.5."""
    col = jnp.arange(GATES)
    return jnp.where((col >= 2 * H2) & (col < 3 * H2), 1.0, 0.5
                     ).astype(jnp.float32)[None, :]


def pack_params(params):
    """One-time packing of all weights into (w_g0, b0, slab)."""
    (w_ih0f, w_hh0f, b0f, w_ih0b, w_hh0b, b0b,
     w_ih1f, w_hh1f, b1f, w_ih1b, w_hh1b, b1b,
     w_fc1, b_fc1, w_fc2, b_fc2) = [p.astype(jnp.float32) for p in params]
    scale = _gate_scale_row()                                  # (1, GATES)

    # Layer-0 input projection weight: fwd columns | bwd columns, pre-scaled.
    zf = jnp.zeros_like(w_ih0f)
    w_g0_fwd = _interleave_cols(w_ih0f, zf) * scale            # (50, GATES)
    w_g0_bwd = _interleave_cols(zf, w_ih0b) * scale            # (50, GATES)
    w_g0 = jnp.concatenate([w_g0_fwd, w_g0_bwd], axis=1)       # (50, 2*GATES)
    b0 = _interleave_cols(b0f, b0b) * scale                    # (1, GATES)

    w_hh0 = _block_hh(w_hh0f, w_hh0b) * scale                  # (2H, GATES)
    w_hh1 = _block_hh(w_hh1f, w_hh1b) * scale
    w_ih1 = _interleave_cols(w_ih1f, w_ih1b) * scale           # (2H, GATES)
    b1 = _interleave_cols(b1f, b1b) * scale                    # (1, GATES)

    slab = jnp.zeros((SLAB_ROWS, SLAB_COLS), jnp.float32)
    slab = slab.at[ROW_WHH0:ROW_WHH0 + H2, 0:GATES].set(w_hh0)
    slab = slab.at[ROW_WIH1:ROW_WIH1 + H2, 0:GATES].set(w_ih1)
    slab = slab.at[ROW_WHH1:ROW_WHH1 + H2, 0:GATES].set(w_hh1)
    slab = slab.at[ROW_B1:ROW_B1 + 1, 0:GATES].set(b1)
    slab = slab.at[ROW_WFC1:ROW_WFC1 + H2, 0:FC1].set(w_fc1)
    slab = slab.at[ROW_BFC1:ROW_BFC1 + 1, 0:FC1].set(b_fc1)
    slab = slab.at[ROW_WFC2:ROW_WFC2 + FC1, 0:OUT].set(w_fc2)
    slab = slab.at[ROW_BFC2:ROW_BFC2 + 1, 0:OUT].set(b_fc2)
    return w_g0, b0, slab


# ----------------------------------------------------------------------------
# Pallas kernel: the latency-critical recurrence + head (2 inputs, 1 output)
# ----------------------------------------------------------------------------
def rnn_kernel(g0_ref, w_ref, out_ref):
    B = out_ref.shape[0]
    T = g0_ref.shape[0] // B

    # Static views into the single packed weight slab (one DMA for everything).
    w_hh0 = w_ref[ROW_WHH0:ROW_WHH0 + H2, 0:GATES]
    w_ih1 = w_ref[ROW_WIH1:ROW_WIH1 + H2, 0:GATES]
    w_hh1 = w_ref[ROW_WHH1:ROW_WHH1 + H2, 0:GATES]
    b1 = w_ref[ROW_B1:ROW_B1 + 1, 0:GATES]
    w_fc1 = w_ref[ROW_WFC1:ROW_WFC1 + H2, 0:FC1]
    b_fc1 = w_ref[ROW_BFC1:ROW_BFC1 + 1, 0:FC1]
    w_fc2 = w_ref[ROW_WFC2:ROW_WFC2 + FC1, 0:OUT]
    b_fc2 = w_ref[ROW_BFC2:ROW_BFC2 + 1, 0:OUT]

    # Lane masks, hoisted once and reused by every step.
    col = lax.broadcasted_iota(jnp.int32, (B, GATES), 1)
    gcell_mask = (col >= 2 * H2) & (col < 3 * H2)   # "g" gate columns (true tanh)
    fwd_gates = (col % H2) < HIDDEN                 # forward-direction gate columns
    col_h = lax.broadcasted_iota(jnp.int32, (B, H2), 1)
    fwd_h = col_h < HIDDEN                          # forward half of hidden state

    def cell(h, c, gin, w_hh):
        # i/f/o pre-activations were pre-scaled by 0.5 (in w_hh columns and in
        # the hoisted input-gate slabs), so one full-width tanh suffices:
        #   g     = tanh(x_g)
        #   i/f/o = sigmoid(x) = 0.5*tanh(x/2) + 0.5
        gates = jnp.dot(h, w_hh, preferred_element_type=jnp.float32) + gin
        th = jnp.tanh(gates)
        act = jnp.where(gcell_mask, th, 0.5 * th + 0.5)
        i = act[:, 0:H2]
        f = act[:, H2:2 * H2]
        g = act[:, 2 * H2:3 * H2]
        o = act[:, 3 * H2:4 * H2]
        c = f * c + i * g
        h = o * jnp.tanh(c)
        return h, c

    zeros = jnp.zeros((B, H2), jnp.float32)

    # ---- layer 0: both directions fused, fully unrolled (static T) ----
    h, c = zeros, zeros
    outs0 = []
    for s in range(T):
        # per-step gates are a static row slice of the sublane-dense g0 slab
        h, c = cell(h, c, g0_ref[s * B:(s + 1) * B, :], w_hh0)
        outs0.append(h)                       # [h0_f(s) | h0_b(T-1-s)]

    # ---- layer-1 input projection: ONE fused (T*B,2H)@(2H,8H) dot ----
    y0_all = jnp.concatenate(
        [jnp.where(fwd_h, outs0[t], outs0[T - 1 - t]) for t in range(T)],
        axis=0)                                                  # (T*B, 2H)
    proj_all = jnp.dot(y0_all, w_ih1, preferred_element_type=jnp.float32) + b1
    projs = [proj_all[t * B:(t + 1) * B, :] for t in range(T)]
    # per fused step s: forward gates use time s, backward gates use time T-1-s
    g1 = [jnp.where(fwd_gates, projs[s], projs[T - 1 - s]) for s in range(T)]

    # ---- layer 1: fused directions, only the final hidden state is needed ----
    h, c = zeros, zeros
    for s in range(T):
        h, c = cell(h, c, g1[s], w_hh1)

    # h == cat(h_n[-2], h_n[-1]) already -> head: fc1 -> relu -> fc2
    hid = jnp.dot(h, w_fc1, preferred_element_type=jnp.float32) + b_fc1
    hid = jnp.maximum(hid, 0.0)
    out_ref[...] = jnp.dot(hid, w_fc2, preferred_element_type=jnp.float32) + b_fc2


# ----------------------------------------------------------------------------
# Wrapper: only the data-dependent g0 projection runs per call
# ----------------------------------------------------------------------------
def rnn_forward(x, packed):
    """x: (B, T, 50) batch-first, like the PyTorch module. packed = pack_params(...)."""
    w_g0, b0, slab = packed
    x = x.astype(jnp.float32)
    B, T, _ = x.shape

    # Hoisted layer-0 input projection (one batched matmul for both directions,
    # bias + 0.5 gate pre-scale already folded into w_g0/b0); backward half is
    # time-reversed so the fused recurrence reads one aligned slab per step.
    p = jnp.einsum('bti,ig->tbg', x, w_g0)                       # (T, B, 2*GATES)
    g0 = p[..., :GATES] + jnp.flip(p[..., GATES:], axis=0) + b0  # (T, B, GATES)
    g0 = g0.reshape(T * B, GATES)                                # sublane-dense

    vmem = pl.BlockSpec(memory_space=pltpu.MemorySpace.VMEM)
    # Whole-model-in-VMEM, grid-less call: total footprint is a few KB, so no
    # tiling / pipelining is needed.  (If batch ever grows, add a parallel
    # batch-tile grid axis; on v7x re-derive tiles against 64 MiB VMEM.)
    return pl.pallas_call(
        rnn_kernel,
        out_shape=jax.ShapeDtypeStruct((B, OUT), jnp.float32),
        in_specs=[vmem, vmem],
        out_specs=vmem,
    )(g0, slab)


# ----------------------------------------------------------------------------
# Synthetic params + pure-JAX reference (unfused, PyTorch semantics)
# ----------------------------------------------------------------------------
def init_params(key):
    """Deterministic synthetic parameters (PyTorch-default-like uniform init).
    LSTM ih/hh biases are pre-summed into one (1, 4H) bias per direction/layer;
    all weights are stored transposed (in_features, out_features)."""
    ks = jax.random.split(key, 16)
    s = 1.0 / float(jnp.sqrt(HIDDEN))

    def u(k, shape, scale):
        return jax.random.uniform(k, shape, jnp.float32, -scale, scale)

    return [
        # layer 0, forward
        u(ks[0], (INPUT_SIZE, 4 * HIDDEN), s),
        u(ks[1], (HIDDEN, 4 * HIDDEN), s),
        u(ks[2], (1, 4 * HIDDEN), 2 * s),
        # layer 0, backward
        u(ks[3], (INPUT_SIZE, 4 * HIDDEN), s),
        u(ks[4], (HIDDEN, 4 * HIDDEN), s),
        u(ks[5], (1, 4 * HIDDEN), 2 * s),
        # layer 1, forward (input = 2*HIDDEN)
        u(ks[6], (2 * HIDDEN, 4 * HIDDEN), s),
        u(ks[7], (HIDDEN, 4 * HIDDEN), s),
        u(ks[8], (1, 4 * HIDDEN), 2 * s),
        # layer 1, backward
        u(ks[9], (2 * HIDDEN, 4 * HIDDEN), s),
        u(ks[10], (HIDDEN, 4 * HIDDEN), s),
        u(ks[11], (1, 4 * HIDDEN), 2 * s),
        # fc1: (10 -> 64)
        u(ks[12], (2 * HIDDEN, FC1), 1.0 / float(jnp.sqrt(2 * HIDDEN))),
        u(ks[13], (1, FC1), 1.0 / float(jnp.sqrt(2 * HIDDEN))),
        # fc2: (64 -> 2)
        u(ks[14], (FC1, OUT), 1.0 / float(jnp.sqrt(FC1))),
        u(ks[15], (1, OUT), 1.0 / float(jnp.sqrt(FC1))),
    ]


def _lstm_step_ref(x_t, h, c, w_ih, w_hh, b):
    """One per-direction LSTM cell step (PyTorch gate order i, f, g, o)."""
    gates = x_t @ w_ih + h @ w_hh + b
    i = jax.nn.sigmoid(gates[:, 0:HIDDEN])
    f = jax.nn.sigmoid(gates[:, HIDDEN:2 * HIDDEN])
    g = jnp.tanh(gates[:, 2 * HIDDEN:3 * HIDDEN])
    o = jax.nn.sigmoid(gates[:, 3 * HIDDEN:4 * HIDDEN])
    c_new = f * c + i * g
    h_new = o * jnp.tanh(c_new)
    return h_new, c_new


def rnn_reference(x, params):
    """Pure-JAX reference of the same forward pass (for correctness check)."""
    B, T, _ = x.shape
    (w_ih0f, w_hh0f, b0f, w_ih0b, w_hh0b, b0b,
     w_ih1f, w_hh1f, b1f, w_ih1b, w_hh1b, b1b,
     w_fc1, b_fc1, w_fc2, b_fc2) = params
    zeros = jnp.zeros((B, HIDDEN), jnp.float32)

    h, c = zeros, zeros
    out0f = []
    for t in range(T):
        h, c = _lstm_step_ref(x[:, t, :], h, c, w_ih0f, w_hh0f, b0f)
        out0f.append(h)

    h, c = zeros, zeros
    out0b = [None] * T
    for t in range(T - 1, -1, -1):
        h, c = _lstm_step_ref(x[:, t, :], h, c, w_ih0b, w_hh0b, b0b)
        out0b[t] = h

    h, c = zeros, zeros
    for t in range(T):
        x_t = jnp.concatenate([out0f[t], out0b[t]], axis=-1)
        h, c = _lstm_step_ref(x_t, h, c, w_ih1f, w_hh1f, b1f)
    h_f1 = h

    h, c = zeros, zeros
    for t in range(T - 1, -1, -1):
        x_t = jnp.concatenate([out0f[t], out0b[t]], axis=-1)
        h, c = _lstm_step_ref(x_t, h, c, w_ih1b, w_hh1b, b1b)
    h_b1 = h

    feat = jnp.concatenate([h_f1, h_b1], axis=-1)
    hid = jnp.maximum(feat @ w_fc1 + b_fc1, 0.0)
    return hid @ w_fc2 + b_fc2


if __name__ == "__main__":
    key = jax.random.PRNGKey(0)
    k_x, k_p = jax.random.split(key)

    B, T = 4, 8
    x = jax.random.normal(k_x, (B, T, INPUT_SIZE), jnp.float32)  # batch_first
    params = init_params(k_p)
    packed = pack_params(params)          # one-time weight packing (cached)

    fwd = jax.jit(rnn_forward)
    out = jax.block_until_ready(fwd(x, packed))

    ref = rnn_reference(x.astype(jnp.float32), params)
    assert out.shape == (B, OUT)
    assert jnp.allclose(out, ref, rtol=1e-3, atol=1e-3), (
        f"mismatch: max abs diff {jnp.max(jnp.abs(out - ref))}")

    print("KERNEL_OK")
</pallas_src>

<mosaic_0001>
module attributes {stable_mosaic.version = 11 : i64} {
  func.func @rnn_kernel(%arg0: memref<32x40xf32, #tpu.memory_space<vmem>>, %arg1: memref<152x128xf32, #tpu.memory_space<vmem>>, %arg2: memref<4x2xf32, #tpu.memory_space<vmem>>) attributes {dimension_semantics = [], scalar_prefetch = 0 : i64, scratch_operands = 0 : i64, tpu.core_type = #tpu.core_type<tc>} {
    %c0 = arith.constant 0 : index
    %c0_0 = arith.constant 0 : index
    %0 = vector.load %arg1[%c0, %c0_0] : memref<152x128xf32, #tpu.memory_space<vmem>>, vector<10x40xf32>
    %c16 = arith.constant 16 : index
    %c0_1 = arith.constant 0 : index
    %1 = vector.load %arg1[%c16, %c0_1] : memref<152x128xf32, #tpu.memory_space<vmem>>, vector<10x40xf32>
    %c32 = arith.constant 32 : index
    %c0_2 = arith.constant 0 : index
    %2 = vector.load %arg1[%c32, %c0_2] : memref<152x128xf32, #tpu.memory_space<vmem>>, vector<10x40xf32>
    %c48 = arith.constant 48 : index
    %c0_3 = arith.constant 0 : index
    %3 = vector.load %arg1[%c48, %c0_3] : memref<152x128xf32, #tpu.memory_space<vmem>>, vector<1x40xf32>
    %c56 = arith.constant 56 : index
    %c0_4 = arith.constant 0 : index
    %4 = vector.load %arg1[%c56, %c0_4] : memref<152x128xf32, #tpu.memory_space<vmem>>, vector<10x64xf32>
    %c72 = arith.constant 72 : index
    %c0_5 = arith.constant 0 : index
    %5 = vector.load %arg1[%c72, %c0_5] : memref<152x128xf32, #tpu.memory_space<vmem>>, vector<1x64xf32>
    %c80 = arith.constant 80 : index
    %c0_6 = arith.constant 0 : index
    %6 = vector.load %arg1[%c80, %c0_6] : memref<152x128xf32, #tpu.memory_space<vmem>>, vector<64x2xf32>
    %c144 = arith.constant 144 : index
    %c0_7 = arith.constant 0 : index
    %7 = vector.load %arg1[%c144, %c0_7] : memref<152x128xf32, #tpu.memory_space<vmem>>, vector<1x2xf32>
    %8 = tpu.iota {dimensions = array<i32: 1>} : vector<4x40xi32>
    %c20_i32 = arith.constant 20 : i32
    %9 = vector.broadcast %c20_i32 : i32 to vector<4x40xi32>
    %10 = arith.cmpi sge, %8, %9 : vector<4x40xi32>
    %c30_i32 = arith.constant 30 : i32
    %11 = vector.broadcast %c30_i32 : i32 to vector<4x40xi32>
    %12 = arith.cmpi slt, %8, %11 : vector<4x40xi32>
    %13 = arith.andi %10, %12 : vector<4x40xi1>
    %c10_i32 = arith.constant 10 : i32
    %c0_i32 = arith.constant 0 : i32
    %14 = arith.cmpi eq, %c10_i32, %c0_i32 : i32
    %c1_i32 = arith.constant 1 : i32
    %15 = arith.select %14, %c1_i32, %c10_i32 : i32
    %16 = vector.broadcast %15 : i32 to vector<4x40xi32>
    %17 = arith.remsi %8, %16 : vector<4x40xi32>
    %c0_i32_8 = arith.constant 0 : i32
    %18 = vector.broadcast %c0_i32_8 : i32 to vector<4x40xi32>
    %19 = arith.cmpi ne, %17, %18 : vector<4x40xi32>
    %c0_i32_9 = arith.constant 0 : i32
    %20 = vector.broadcast %c0_i32_9 : i32 to vector<4x40xi32>
    %21 = arith.cmpi slt, %17, %20 : vector<4x40xi32>
    %c0_i32_10 = arith.constant 0 : i32
    %22 = arith.cmpi slt, %15, %c0_i32_10 : i32
    %23 = vector.broadcast %22 : i1 to vector<4x40xi1>
    %24 = vector.broadcast %23 : vector<4x40xi1> to vector<4x40xi1>
    %25 = arith.xori %21, %24 : vector<4x40xi1>
    %26 = arith.andi %25, %19 : vector<4x40xi1>
    %27 = vector.broadcast %15 : i32 to vector<4x40xi32>
    %28 = arith.addi %17, %27 : vector<4x40xi32>
    %29 = arith.select %26, %28, %17 : vector<4x40xi1>, vector<4x40xi32>
    %c5_i32 = arith.constant 5 : i32
    %30 = vector.broadcast %c5_i32 : i32 to vector<4x40xi32>
    %31 = arith.cmpi slt, %29, %30 : vector<4x40xi32>
    %32 = tpu.iota {dimensions = array<i32: 1>} : vector<4x10xi32>
    %c5_i32_11 = arith.constant 5 : i32
    %33 = vector.broadcast %c5_i32_11 : i32 to vector<4x10xi32>
    %34 = arith.cmpi slt, %32, %33 : vector<4x10xi32>
    %cst = arith.constant 0.000000e+00 : f32
    %35 = vector.broadcast %cst : f32 to vector<4x10xf32>
    %c0_12 = arith.constant 0 : index
    %c0_13 = arith.constant 0 : index
    %36 = vector.load %arg0[%c0_12, %c0_13] : memref<32x40xf32, #tpu.memory_space<vmem>>, vector<4x40xf32>
    %cst_14 = arith.constant dense<0.000000e+00> : vector<4x40xf32>
    %37 = tpu.matmul %35, %0, %cst_14 {dimension_numbers = #tpu.dot_dimension_numbers<[1], [0], [0], [1], [0, 0, 1, 1], [], []>} : vector<4x10xf32>, vector<10x40xf32>, vector<4x40xf32> -> vector<4x40xf32>
    %38 = arith.addf %37, %36 : vector<4x40xf32>
    %39 = math.tanh %38 : vector<4x40xf32>
    %cst_15 = arith.constant 5.000000e-01 : f32
    %40 = vector.broadcast %cst_15 : f32 to vector<4x40xf32>
    %41 = arith.mulf %40, %39 : vector<4x40xf32>
    %cst_16 = arith.constant 5.000000e-01 : f32
    %42 = vector.broadcast %cst_16 : f32 to vector<4x40xf32>
    %43 = arith.addf %41, %42 : vector<4x40xf32>
    %44 = arith.select %13, %39, %43 : vector<4x40xi1>, vector<4x40xf32>
    %45 = vector.extract_strided_slice %44 {offsets = [0, 0], sizes = [4, 10], strides = [1, 1]} : vector<4x40xf32> to vector<4x10xf32>
    %46 = vector.extract_strided_slice %44 {offsets = [0, 10], sizes = [4, 10], strides = [1, 1]} : vector<4x40xf32> to vector<4x10xf32>
    %47 = vector.extract_strided_slice %44 {offsets = [0, 20], sizes = [4, 10], strides = [1, 1]} : vector<4x40xf32> to vector<4x10xf32>
    %48 = vector.extract_strided_slice %44 {offsets = [0, 30], sizes = [4, 10], strides = [1, 1]} : vector<4x40xf32> to vector<4x10xf32>
    %49 = arith.mulf %46, %35 : vector<4x10xf32>
    %50 = arith.mulf %45, %47 : vector<4x10xf32>
    %51 = arith.addf %49, %50 : vector<4x10xf32>
    %52 = math.tanh %51 : vector<4x10xf32>
    %53 = arith.mulf %48, %52 : vector<4x10xf32>
    %c4 = arith.constant 4 : index
    %c0_17 = arith.constant 0 : index
    %54 = vector.load %arg0[%c4, %c0_17] : memref<32x40xf32, #tpu.memory_space<vmem>>, vector<4x40xf32>
    %cst_18 = arith.constant dense<0.000000e+00> : vector<4x40xf32>
    %55 = tpu.matmul %53, %0, %cst_18 {dimension_numbers = #tpu.dot_dimension_numbers<[1], [0], [0], [1], [0, 0, 1, 1], [], []>} : vector<4x10xf32>, vector<10x40xf32>, vector<4x40xf32> -> vector<4x40xf32>
    %56 = arith.addf %55, %54 : vector<4x40xf32>
    %57 = math.tanh %56 : vector<4x40xf32>
    %cst_19 = arith.constant 5.000000e-01 : f32
    %58 = vector.broadcast %cst_19 : f32 to vector<4x40xf32>
    %59 = arith.mulf %58, %57 : vector<4x40xf32>
    %cst_20 = arith.constant 5.000000e-01 : f32
    %60 = vector.broadcast %cst_20 : f32 to vector<4x40xf32>
    %61 = arith.addf %59, %60 : vector<4x40xf32>
    %62 = arith.select %13, %57, %61 : vector<4x40xi1>, vector<4x40xf32>
    %63 = vector.extract_strided_slice %62 {offsets = [0, 0], sizes = [4, 10], strides = [1, 1]} : vector<4x40xf32> to vector<4x10xf32>
    %64 = vector.extract_strided_slice %62 {offsets = [0, 10], sizes = [4, 10], strides = [1, 1]} : vector<4x40xf32> to vector<4x10xf32>
    %65 = vector.extract_strided_slice %62 {offsets = [0, 20], sizes = [4, 10], strides = [1, 1]} : vector<4x40xf32> to vector<4x10xf32>
    %66 = vector.extract_strided_slice %62 {offsets = [0, 30], sizes = [4, 10], strides = [1, 1]} : vector<4x40xf32> to vector<4x10xf32>
    %67 = arith.mulf %64, %51 : vector<4x10xf32>
    %68 = arith.mulf %63, %65 : vector<4x10xf32>
    %69 = arith.addf %67, %68 : vector<4x10xf32>
    %70 = math.tanh %69 : vector<4x10xf32>
    %71 = arith.mulf %66, %70 : vector<4x10xf32>
    %c8 = arith.constant 8 : index
    %c0_21 = arith.constant 0 : index
    %72 = vector.load %arg0[%c8, %c0_21] : memref<32x40xf32, #tpu.memory_space<vmem>>, vector<4x40xf32>
    %cst_22 = arith.constant dense<0.000000e+00> : vector<4x40xf32>
    %73 = tpu.matmul %71, %0, %cst_22 {dimension_numbers = #tpu.dot_dimension_numbers<[1], [0], [0], [1], [0, 0, 1, 1], [], []>} : vector<4x10xf32>, vector<10x40xf32>, vector<4x40xf32> -> vector<4x40xf32>
    %74 = arith.addf %73, %72 : vector<4x40xf32>
    %75 = math.tanh %74 : vector<4x40xf32>
    %cst_23 = arith.constant 5.000000e-01 : f32
    %76 = vector.broadcast %cst_23 : f32 to vector<4x40xf32>
    %77 = arith.mulf %76, %75 : vector<4x40xf32>
    %cst_24 = arith.constant 5.000000e-01 : f32
    %78 = vector.broadcast %cst_24 : f32 to vector<4x40xf32>
    %79 = arith.addf %77, %78 : vector<4x40xf32>
    %80 = arith.select %13, %75, %79 : vector<4x40xi1>, vector<4x40xf32>
    %81 = vector.extract_strided_slice %80 {offsets = [0, 0], sizes = [4, 10], strides = [1, 1]} : vector<4x40xf32> to vector<4x10xf32>
    %82 = vector.extract_strided_slice %80 {offsets = [0, 10], sizes = [4, 10], strides = [1, 1]} : vector<4x40xf32> to vector<4x10xf32>
    %83 = vector.extract_strided_slice %80 {offsets = [0, 20], sizes = [4, 10], strides = [1, 1]} : vector<4x40xf32> to vector<4x10xf32>
    %84 = vector.extract_strided_slice %80 {offsets = [0, 30], sizes = [4, 10], strides = [1, 1]} : vector<4x40xf32> to vector<4x10xf32>
    %85 = arith.mulf %82, %69 : vector<4x10xf32>
    %86 = arith.mulf %81, %83 : vector<4x10xf32>
    %87 = arith.addf %85, %86 : vector<4x10xf32>
    %88 = math.tanh %87 : vector<4x10xf32>
    %89 = arith.mulf %84, %88 : vector<4x10xf32>
    %c12 = arith.constant 12 : index
    %c0_25 = arith.constant 0 : index
    %90 = vector.load %arg0[%c12, %c0_25] : memref<32x40xf32, #tpu.memory_space<vmem>>, vector<4x40xf32>
    %cst_26 = arith.constant dense<0.000000e+00> : vector<4x40xf32>
    %91 = tpu.matmul %89, %0, %cst_26 {dimension_numbers = #tpu.dot_dimension_numbers<[1], [0], [0], [1], [0, 0, 1, 1], [], []>} : vector<4x10xf32>, vector<10x40xf32>, vector<4x40xf32> -> vector<4x40xf32>
    %92 = arith.addf %91, %90 : vector<4x40xf32>
    %93 = math.tanh %92 : vector<4x40xf32>
    %cst_27 = arith.constant 5.000000e-01 : f32
    %94 = vector.broadcast %cst_27 : f32 to vector<4x40xf32>
    %95 = arith.mulf %94, %93 : vector<4x40xf32>
    %cst_28 = arith.constant 5.000000e-01 : f32
    %96 = vector.broadcast %cst_28 : f32 to vector<4x40xf32>
    %97 = arith.addf %95, %96 : vector<4x40xf32>
    %98 = arith.select %13, %93, %97 : vector<4x40xi1>, vector<4x40xf32>
    %99 = vector.extract_strided_slice %98 {offsets = [0, 0], sizes = [4, 10], strides = [1, 1]} : vector<4x40xf32> to vector<4x10xf32>
    %100 = vector.extract_strided_slice %98 {offsets = [0, 10], sizes = [4, 10], strides = [1, 1]} : vector<4x40xf32> to vector<4x10xf32>
    %101 = vector.extract_strided_slice %98 {offsets = [0, 20], sizes = [4, 10], strides = [1, 1]} : vector<4x40xf32> to vector<4x10xf32>
    %102 = vector.extract_strided_slice %98 {offsets = [0, 30], sizes = [4, 10], strides = [1, 1]} : vector<4x40xf32> to vector<4x10xf32>
    %103 = arith.mulf %100, %87 : vector<4x10xf32>
    %104 = arith.mulf %99, %101 : vector<4x10xf32>
    %105 = arith.addf %103, %104 : vector<4x10xf32>
    %106 = math.tanh %105 : vector<4x10xf32>
    %107 = arith.mulf %102, %106 : vector<4x10xf32>
    %c16_29 = arith.constant 16 : index
    %c0_30 = arith.constant 0 : index
    %108 = vector.load %arg0[%c16_29, %c0_30] : memref<32x40xf32, #tpu.memory_space<vmem>>, vector<4x40xf32>
    %cst_31 = arith.constant dense<0.000000e+00> : vector<4x40xf32>
    %109 = tpu.matmul %107, %0, %cst_31 {dimension_numbers = #tpu.dot_dimension_numbers<[1], [0], [0], [1], [0, 0, 1, 1], [], []>} : vector<4x10xf32>, vector<10x40xf32>, vector<4x40xf32> -> vector<4x40xf32>
    %110 = arith.addf %109, %108 : vector<4x40xf32>
    %111 = math.tanh %110 : vector<4x40xf32>
    %cst_32 = arith.constant 5.000000e-01 : f32
    %112 = vector.broadcast %cst_32 : f32 to vector<4x40xf32>
    %113 = arith.mulf %112, %111 : vector<4x40xf32>
    %cst_33 = arith.constant 5.000000e-01 : f32
    %114 = vector.broadcast %cst_33 : f32 to vector<4x40xf32>
    %115 = arith.addf %113, %114 : vector<4x40xf32>
    %116 = arith.select %13, %111, %115 : vector<4x40xi1>, vector<4x40xf32>
    %117 = vector.extract_strided_slice %116 {offsets = [0, 0], sizes = [4, 10], strides = [1, 1]} : vector<4x40xf32> to vector<4x10xf32>
    %118 = vector.extract_strided_slice %116 {offsets = [0, 10], sizes = [4, 10], strides = [1, 1]} : vector<4x40xf32> to vector<4x10xf32>
    %119 = vector.extract_strided_slice %116 {offsets = [0, 20], sizes = [4, 10], strides = [1, 1]} : vector<4x40xf32> to vector<4x10xf32>
    %120 = vector.extract_strided_slice %116 {offsets = [0, 30], sizes = [4, 10], strides = [1, 1]} : vector<4x40xf32> to vector<4x10xf32>
    %121 = arith.mulf %118, %105 : vector<4x10xf32>
    %122 = arith.mulf %117, %119 : vector<4x10xf32>
    %123 = arith.addf %121, %122 : vector<4x10xf32>
    %124 = math.tanh %123 : vector<4x10xf32>
    %125 = arith.mulf %120, %124 : vector<4x10xf32>
    %c20 = arith.constant 20 : index
    %c0_34 = arith.constant 0 : index
    %126 = vector.load %arg0[%c20, %c0_34] : memref<32x40xf32, #tpu.memory_space<vmem>>, vector<4x40xf32>
    %cst_35 = arith.constant dense<0.000000e+00> : vector<4x40xf32>
    %127 = tpu.matmul %125, %0, %cst_35 {dimension_numbers = #tpu.dot_dimension_numbers<[1], [0], [0], [1], [0, 0, 1, 1], [], []>} : vector<4x10xf32>, vector<10x40xf32>, vector<4x40xf32> -> vector<4x40xf32>
    %128 = arith.addf %127, %126 : vector<4x40xf32>
    %129 = math.tanh %128 : vector<4x40xf32>
    %cst_36 = arith.constant 5.000000e-01 : f32
    %130 = vector.broadcast %cst_36 : f32 to vector<4x40xf32>
    %131 = arith.mulf %130, %129 : vector<4x40xf32>
    %cst_37 = arith.constant 5.000000e-01 : f32
    %132 = vector.broadcast %cst_37 : f32 to vector<4x40xf32>
    %133 = arith.addf %131, %132 : vector<4x40xf32>
    %134 = arith.select %13, %129, %133 : vector<4x40xi1>, vector<4x40xf32>
    %135 = vector.extract_strided_slice %134 {offsets = [0, 0], sizes = [4, 10], strides = [1, 1]} : vector<4x40xf32> to vector<4x10xf32>
    %136 = vector.extract_strided_slice %134 {offsets = [0, 10], sizes = [4, 10], strides = [1, 1]} : vector<4x40xf32> to vector<4x10xf32>
    %137 = vector.extract_strided_slice %134 {offsets = [0, 20], sizes = [4, 10], strides = [1, 1]} : vector<4x40xf32> to vector<4x10xf32>
    %138 = vector.extract_strided_slice %134 {offsets = [0, 30], sizes = [4, 10], strides = [1, 1]} : vector<4x40xf32> to vector<4x10xf32>
    %139 = arith.mulf %136, %123 : vector<4x10xf32>
    %140 = arith.mulf %135, %137 : vector<4x10xf32>
    %141 = arith.addf %139, %140 : vector<4x10xf32>
    %142 = math.tanh %141 : vector<4x10xf32>
    %143 = arith.mulf %138, %142 : vector<4x10xf32>
    %c24 = arith.constant 24 : index
    %c0_38 = arith.constant 0 : index
    %144 = vector.load %arg0[%c24, %c0_38] : memref<32x40xf32, #tpu.memory_space<vmem>>, vector<4x40xf32>
    %cst_39 = arith.constant dense<0.000000e+00> : vector<4x40xf32>
    %145 = tpu.matmul %143, %0, %cst_39 {dimension_numbers = #tpu.dot_dimension_numbers<[1], [0], [0], [1], [0, 0, 1, 1], [], []>} : vector<4x10xf32>, vector<10x40xf32>, vector<4x40xf32> -> vector<4x40xf32>
    %146 = arith.addf %145, %144 : vector<4x40xf32>
    %147 = math.tanh %146 : vector<4x40xf32>
    %cst_40 = arith.constant 5.000000e-01 : f32
    %148 = vector.broadcast %cst_40 : f32 to vector<4x40xf32>
    %149 = arith.mulf %148, %147 : vector<4x40xf32>
    %cst_41 = arith.constant 5.000000e-01 : f32
    %150 = vector.broadcast %cst_41 : f32 to vector<4x40xf32>
    %151 = arith.addf %149, %150 : vector<4x40xf32>
    %152 = arith.select %13, %147, %151 : vector<4x40xi1>, vector<4x40xf32>
    %153 = vector.extract_strided_slice %152 {offsets = [0, 0], sizes = [4, 10], strides = [1, 1]} : vector<4x40xf32> to vector<4x10xf32>
    %154 = vector.extract_strided_slice %152 {offsets = [0, 10], sizes = [4, 10], strides = [1, 1]} : vector<4x40xf32> to vector<4x10xf32>
    %155 = vector.extract_strided_slice %152 {offsets = [0, 20], sizes = [4, 10], strides = [1, 1]} : vector<4x40xf32> to vector<4x10xf32>
    %156 = vector.extract_strided_slice %152 {offsets = [0, 30], sizes = [4, 10], strides = [1, 1]} : vector<4x40xf32> to vector<4x10xf32>
    %157 = arith.mulf %154, %141 : vector<4x10xf32>
    %158 = arith.mulf %153, %155 : vector<4x10xf32>
    %159 = arith.addf %157, %158 : vector<4x10xf32>
    %160 = math.tanh %159 : vector<4x10xf32>
    %161 = arith.mulf %156, %160 : vector<4x10xf32>
    %c28 = arith.constant 28 : index
    %c0_42 = arith.constant 0 : index
    %162 = vector.load %arg0[%c28, %c0_42] : memref<32x40xf32, #tpu.memory_space<vmem>>, vector<4x40xf32>
    %cst_43 = arith.constant dense<0.000000e+00> : vector<4x40xf32>
    %163 = tpu.matmul %161, %0, %cst_43 {dimension_numbers = #tpu.dot_dimension_numbers<[1], [0], [0], [1], [0, 0, 1, 1], [], []>} : vector<4x10xf32>, vector<10x40xf32>, vector<4x40xf32> -> vector<4x40xf32>
    %164 = arith.addf %163, %162 : vector<4x40xf32>
    %165 = math.tanh %164 : vector<4x40xf32>
    %cst_44 = arith.constant 5.000000e-01 : f32
    %166 = vector.broadcast %cst_44 : f32 to vector<4x40xf32>
    %167 = arith.mulf %166, %165 : vector<4x40xf32>
    %cst_45 = arith.constant 5.000000e-01 : f32
    %168 = vector.broadcast %cst_45 : f32 to vector<4x40xf32>
    %169 = arith.addf %167, %168 : vector<4x40xf32>
    %170 = arith.select %13, %165, %169 : vector<4x40xi1>, vector<4x40xf32>
    %171 = vector.extract_strided_slice %170 {offsets = [0, 0], sizes = [4, 10], strides = [1, 1]} : vector<4x40xf32> to vector<4x10xf32>
    %172 = vector.extract_strided_slice %170 {offsets = [0, 10], sizes = [4, 10], strides = [1, 1]} : vector<4x40xf32> to vector<4x10xf32>
    %173 = vector.extract_strided_slice %170 {offsets = [0, 20], sizes = [4, 10], strides = [1, 1]} : vector<4x40xf32> to vector<4x10xf32>
    %174 = vector.extract_strided_slice %170 {offsets = [0, 30], sizes = [4, 10], strides = [1, 1]} : vector<4x40xf32> to vector<4x10xf32>
    %175 = arith.mulf %172, %159 : vector<4x10xf32>
    %176 = arith.mulf %171, %173 : vector<4x10xf32>
    %177 = arith.addf %175, %176 : vector<4x10xf32>
    %178 = math.tanh %177 : vector<4x10xf32>
    %179 = arith.mulf %174, %178 : vector<4x10xf32>
    %180 = arith.select %34, %53, %179 : vector<4x10xi1>, vector<4x10xf32>
    %181 = arith.select %34, %71, %161 : vector<4x10xi1>, vector<4x10xf32>
    %182 = arith.select %34, %89, %143 : vector<4x10xi1>, vector<4x10xf32>
    %183 = arith.select %34, %107, %125 : vector<4x10xi1>, vector<4x10xf32>
    %184 = arith.select %34, %125, %107 : vector<4x10xi1>, vector<4x10xf32>
    %185 = arith.select %34, %143, %89 : vector<4x10xi1>, vector<4x10xf32>
    %186 = arith.select %34, %161, %71 : vector<4x10xi1>, vector<4x10xf32>
    %187 = arith.select %34, %179, %53 : vector<4x10xi1>, vector<4x10xf32>
    %188 = tpu.concatenate %180, %181, %182, %183, %184, %185, %186, %187 in 0 : vector<4x10xf32>, vector<4x10xf32>, vector<4x10xf32>, vector<4x10xf32>, vector<4x10xf32>, vector<4x10xf32>, vector<4x10xf32>, vector<4x10xf32> -> vector<32x10xf32>
    %cst_46 = arith.constant dense<0.000000e+00> : vector<32x40xf32>
    %189 = tpu.matmul %188, %1, %cst_46 {dimension_numbers = #tpu.dot_dimension_numbers<[1], [0], [0], [1], [0, 0, 1, 1], [], []>} : vector<32x10xf32>, vector<10x40xf32>, vector<32x40xf32> -> vector<32x40xf32>
    %190 = vector.broadcast %3 : vector<1x40xf32> to vector<32x40xf32>
    %191 = arith.addf %189, %190 : vector<32x40xf32>
    %192 = vector.extract_strided_slice %191 {offsets = [0, 0], sizes = [4, 40], strides = [1, 1]} : vector<32x40xf32> to vector<4x40xf32>
    %193 = vector.extract_strided_slice %191 {offsets = [4, 0], sizes = [4, 40], strides = [1, 1]} : vector<32x40xf32> to vector<4x40xf32>
    %194 = vector.extract_strided_slice %191 {offsets = [8, 0], sizes = [4, 40], strides = [1, 1]} : vector<32x40xf32> to vector<4x40xf32>
    %195 = vector.extract_strided_slice %191 {offsets = [12, 0], sizes = [4, 40], strides = [1, 1]} : vector<32x40xf32> to vector<4x40xf32>
    %196 = vector.extract_strided_slice %191 {offsets = [16, 0], sizes = [4, 40], strides = [1, 1]} : vector<32x40xf32> to vector<4x40xf32>
    %197 = vector.extract_strided_slice %191 {offsets = [20, 0], sizes = [4, 40], strides = [1, 1]} : vector<32x40xf32> to vector<4x40xf32>
    %198 = vector.extract_strided_slice %191 {offsets = [24, 0], sizes = [4, 40], strides = [1, 1]} : vector<32x40xf32> to vector<4x40xf32>
    %199 = vector.extract_strided_slice %191 {offsets = [28, 0], sizes = [4, 40], strides = [1, 1]} : vector<32x40xf32> to vector<4x40xf32>
    %200 = arith.select %31, %192, %199 : vector<4x40xi1>, vector<4x40xf32>
    %201 = arith.select %31, %193, %198 : vector<4x40xi1>, vector<4x40xf32>
    %202 = arith.select %31, %194, %197 : vector<4x40xi1>, vector<4x40xf32>
    %203 = arith.select %31, %195, %196 : vector<4x40xi1>, vector<4x40xf32>
    %204 = arith.select %31, %196, %195 : vector<4x40xi1>, vector<4x40xf32>
    %205 = arith.select %31, %197, %194 : vector<4x40xi1>, vector<4x40xf32>
    %206 = arith.select %31, %198, %193 : vector<4x40xi1>, vector<4x40xf32>
    %207 = arith.select %31, %199, %192 : vector<4x40xi1>, vector<4x40xf32>
    %cst_47 = arith.constant dense<0.000000e+00> : vector<4x40xf32>
    %208 = tpu.matmul %35, %2, %cst_47 {dimension_numbers = #tpu.dot_dimension_numbers<[1], [0], [0], [1], [0, 0, 1, 1], [], []>} : vector<4x10xf32>, vector<10x40xf32>, vector<4x40xf32> -> vector<4x40xf32>
    %209 = arith.addf %208, %200 : vector<4x40xf32>
    %210 = math.tanh %209 : vector<4x40xf32>
    %cst_48 = arith.constant 5.000000e-01 : f32
    %211 = vector.broadcast %cst_48 : f32 to vector<4x40xf32>
    %212 = arith.mulf %211, %210 : vector<4x40xf32>
    %cst_49 = arith.constant 5.000000e-01 : f32
    %213 = vector.broadcast %cst_49 : f32 to vector<4x40xf32>
    %214 = arith.addf %212, %213 : vector<4x40xf32>
    %215 = arith.select %13, %210, %214 : vector<4x40xi1>, vector<4x40xf32>
    %216 = vector.extract_strided_slice %215 {offsets = [0, 0], sizes = [4, 10], strides = [1, 1]} : vector<4x40xf32> to vector<4x10xf32>
    %217 = vector.extract_strided_slice %215 {offsets = [0, 10], sizes = [4, 10], strides = [1, 1]} : vector<4x40xf32> to vector<4x10xf32>
    %218 = vector.extract_strided_slice %215 {offsets = [0, 20], sizes = [4, 10], strides = [1, 1]} : vector<4x40xf32> to vector<4x10xf32>
    %219 = vector.extract_strided_slice %215 {offsets = [0, 30], sizes = [4, 10], strides = [1, 1]} : vector<4x40xf32> to vector<4x10xf32>
    %220 = arith.mulf %217, %35 : vector<4x10xf32>
    %221 = arith.mulf %216, %218 : vector<4x10xf32>
    %222 = arith.addf %220, %221 : vector<4x10xf32>
    %223 = math.tanh %222 : vector<4x10xf32>
    %224 = arith.mulf %219, %223 : vector<4x10xf32>
    %cst_50 = arith.constant dense<0.000000e+00> : vector<4x40xf32>
    %225 = tpu.matmul %224, %2, %cst_50 {dimension_numbers = #tpu.dot_dimension_numbers<[1], [0], [0], [1], [0, 0, 1, 1], [], []>} : vector<4x10xf32>, vector<10x40xf32>, vector<4x40xf32> -> vector<4x40xf32>
    %226 = arith.addf %225, %201 : vector<4x40xf32>
    %227 = math.tanh %226 : vector<4x40xf32>
    %cst_51 = arith.constant 5.000000e-01 : f32
    %228 = vector.broadcast %cst_51 : f32 to vector<4x40xf32>
    %229 = arith.mulf %228, %227 : vector<4x40xf32>
    %cst_52 = arith.constant 5.000000e-01 : f32
    %230 = vector.broadcast %cst_52 : f32 to vector<4x40xf32>
    %231 = arith.addf %229, %230 : vector<4x40xf32>
    %232 = arith.select %13, %227, %231 : vector<4x40xi1>, vector<4x40xf32>
    %233 = vector.extract_strided_slice %232 {offsets = [0, 0], sizes = [4, 10], strides = [1, 1]} : vector<4x40xf32> to vector<4x10xf32>
    %234 = vector.extract_strided_slice %232 {offsets = [0, 10], sizes = [4, 10], strides = [1, 1]} : vector<4x40xf32> to vector<4x10xf32>
    %235 = vector.extract_strided_slice %232 {offsets = [0, 20], sizes = [4, 10], strides = [1, 1]} : vector<4x40xf32> to vector<4x10xf32>
    %236 = vector.extract_strided_slice %232 {offsets = [0, 30], sizes = [4, 10], strides = [1, 1]} : vector<4x40xf32> to vector<4x10xf32>
    %237 = arith.mulf %234, %222 : vector<4x10xf32>
    %238 = arith.mulf %233, %235 : vector<4x10xf32>
    %239 = arith.addf %237, %238 : vector<4x10xf32>
    %240 = math.tanh %239 : vector<4x10xf32>
    %241 = arith.mulf %236, %240 : vector<4x10xf32>
    %cst_53 = arith.constant dense<0.000000e+00> : vector<4x40xf32>
    %242 = tpu.matmul %241, %2, %cst_53 {dimension_numbers = #tpu.dot_dimension_numbers<[1], [0], [0], [1], [0, 0, 1, 1], [], []>} : vector<4x10xf32>, vector<10x40xf32>, vector<4x40xf32> -> vector<4x40xf32>
    %243 = arith.addf %242, %202 : vector<4x40xf32>
    %244 = math.tanh %243 : vector<4x40xf32>
    %cst_54 = arith.constant 5.000000e-01 : f32
    %245 = vector.broadcast %cst_54 : f32 to vector<4x40xf32>
    %246 = arith.mulf %245, %244 : vector<4x40xf32>
    %cst_55 = arith.constant 5.000000e-01 : f32
    %247 = vector.broadcast %cst_55 : f32 to vector<4x40xf32>
    %248 = arith.addf %246, %247 : vector<4x40xf32>
    %249 = arith.select %13, %244, %248 : vector<4x40xi1>, vector<4x40xf32>
    %250 = vector.extract_strided_slice %249 {offsets = [0, 0], sizes = [4, 10], strides = [1, 1]} : vector<4x40xf32> to vector<4x10xf32>
    %251 = vector.extract_strided_slice %249 {offsets = [0, 10], sizes = [4, 10], strides = [1, 1]} : vector<4x40xf32> to vector<4x10xf32>
    %252 = vector.extract_strided_slice %249 {offsets = [0, 20], sizes = [4, 10], strides = [1, 1]} : vector<4x40xf32> to vector<4x10xf32>
    %253 = vector.extract_strided_slice %249 {offsets = [0, 30], sizes = [4, 10], strides = [1, 1]} : vector<4x40xf32> to vector<4x10xf32>
    %254 = arith.mulf %251, %239 : vector<4x10xf32>
    %255 = arith.mulf %250, %252 : vector<4x10xf32>
    %256 = arith.addf %254, %255 : vector<4x10xf32>
    %257 = math.tanh %256 : vector<4x10xf32>
    %258 = arith.mulf %253, %257 : vector<4x10xf32>
    %cst_56 = arith.constant dense<0.000000e+00> : vector<4x40xf32>
    %259 = tpu.matmul %258, %2, %cst_56 {dimension_numbers = #tpu.dot_dimension_numbers<[1], [0], [0], [1], [0, 0, 1, 1], [], []>} : vector<4x10xf32>, vector<10x40xf32>, vector<4x40xf32> -> vector<4x40xf32>
    %260 = arith.addf %259, %203 : vector<4x40xf32>
    %261 = math.tanh %260 : vector<4x40xf32>
    %cst_57 = arith.constant 5.000000e-01 : f32
    %262 = vector.broadcast %cst_57 : f32 to vector<4x40xf32>
    %263 = arith.mulf %262, %261 : vector<4x40xf32>
    %cst_58 = arith.constant 5.000000e-01 : f32
    %264 = vector.broadcast %cst_58 : f32 to vector<4x40xf32>
    %265 = arith.addf %263, %264 : vector<4x40xf32>
    %266 = arith.select %13, %261, %265 : vector<4x40xi1>, vector<4x40xf32>
    %267 = vector.extract_strided_slice %266 {offsets = [0, 0], sizes = [4, 10], strides = [1, 1]} : vector<4x40xf32> to vector<4x10xf32>
    %268 = vector.extract_strided_slice %266 {offsets = [0, 10], sizes = [4, 10], strides = [1, 1]} : vector<4x40xf32> to vector<4x10xf32>
    %269 = vector.extract_strided_slice %266 {offsets = [0, 20], sizes = [4, 10], strides = [1, 1]} : vector<4x40xf32> to vector<4x10xf32>
    %270 = vector.extract_strided_slice %266 {offsets = [0, 30], sizes = [4, 10], strides = [1, 1]} : vector<4x40xf32> to vector<4x10xf32>
    %271 = arith.mulf %268, %256 : vector<4x10xf32>
    %272 = arith.mulf %267, %269 : vector<4x10xf32>
    %273 = arith.addf %271, %272 : vector<4x10xf32>
    %274 = math.tanh %273 : vector<4x10xf32>
    %275 = arith.mulf %270, %274 : vector<4x10xf32>
    %cst_59 = arith.constant dense<0.000000e+00> : vector<4x40xf32>
    %276 = tpu.matmul %275, %2, %cst_59 {dimension_numbers = #tpu.dot_dimension_numbers<[1], [0], [0], [1], [0, 0, 1, 1], [], []>} : vector<4x10xf32>, vector<10x40xf32>, vector<4x40xf32> -> vector<4x40xf32>
    %277 = arith.addf %276, %204 : vector<4x40xf32>
    %278 = math.tanh %277 : vector<4x40xf32>
    %cst_60 = arith.constant 5.000000e-01 : f32
    %279 = vector.broadcast %cst_60 : f32 to vector<4x40xf32>
    %280 = arith.mulf %279, %278 : vector<4x40xf32>
    %cst_61 = arith.constant 5.000000e-01 : f32
    %281 = vector.broadcast %cst_61 : f32 to vector<4x40xf32>
    %282 = arith.addf %280, %281 : vector<4x40xf32>
    %283 = arith.select %13, %278, %282 : vector<4x40xi1>, vector<4x40xf32>
    %284 = vector.extract_strided_slice %283 {offsets = [0, 0], sizes = [4, 10], strides = [1, 1]} : vector<4x40xf32> to vector<4x10xf32>
    %285 = vector.extract_strided_slice %283 {offsets = [0, 10], sizes = [4, 10], strides = [1, 1]} : vector<4x40xf32> to vector<4x10xf32>
    %286 = vector.extract_strided_slice %283 {offsets = [0, 20], sizes = [4, 10], strides = [1, 1]} : vector<4x40xf32> to vector<4x10xf32>
    %287 = vector.extract_strided_slice %283 {offsets = [0, 30], sizes = [4, 10], strides = [1, 1]} : vector<4x40xf32> to vector<4x10xf32>
    %288 = arith.mulf %285, %273 : vector<4x10xf32>
    %289 = arith.mulf %284, %286 : vector<4x10xf32>
    %290 = arith.addf %288, %289 : vector<4x10xf32>
    %291 = math.tanh %290 : vector<4x10xf32>
    %292 = arith.mulf %287, %291 : vector<4x10xf32>
    %cst_62 = arith.constant dense<0.000000e+00> : vector<4x40xf32>
    %293 = tpu.matmul %292, %2, %cst_62 {dimension_numbers = #tpu.dot_dimension_numbers<[1], [0], [0], [1], [0, 0, 1, 1], [], []>} : vector<4x10xf32>, vector<10x40xf32>, vector<4x40xf32> -> vector<4x40xf32>
    %294 = arith.addf %293, %205 : vector<4x40xf32>
    %295 = math.tanh %294 : vector<4x40xf32>
    %cst_63 = arith.constant 5.000000e-01 : f32
    %296 = vector.broadcast %cst_63 : f32 to vector<4x40xf32>
    %297 = arith.mulf %296, %295 : vector<4x40xf32>
    %cst_64 = arith.constant 5.000000e-01 : f32
    %298 = vector.broadcast %cst_64 : f32 to vector<4x40xf32>
    %299 = arith.addf %297, %298 : vector<4x40xf32>
    %300 = arith.select %13, %295, %299 : vector<4x40xi1>, vector<4x40xf32>
    %301 = vector.extract_strided_slice %300 {offsets = [0, 0], sizes = [4, 10], strides = [1, 1]} : vector<4x40xf32> to vector<4x10xf32>
    %302 = vector.extract_strided_slice %300 {offsets = [0, 10], sizes = [4, 10], strides = [1, 1]} : vector<4x40xf32> to vector<4x10xf32>
    %303 = vector.extract_strided_slice %300 {offsets = [0, 20], sizes = [4, 10], strides = [1, 1]} : vector<4x40xf32> to vector<4x10xf32>
    %304 = vector.extract_strided_slice %300 {offsets = [0, 30], sizes = [4, 10], strides = [1, 1]} : vector<4x40xf32> to vector<4x10xf32>
    %305 = arith.mulf %302, %290 : vector<4x10xf32>
    %306 = arith.mulf %301, %303 : vector<4x10xf32>
    %307 = arith.addf %305, %306 : vector<4x10xf32>
    %308 = math.tanh %307 : vector<4x10xf32>
    %309 = arith.mulf %304, %308 : vector<4x10xf32>
    %cst_65 = arith.constant dense<0.000000e+00> : vector<4x40xf32>
    %310 = tpu.matmul %309, %2, %cst_65 {dimension_numbers = #tpu.dot_dimension_numbers<[1], [0], [0], [1], [0, 0, 1, 1], [], []>} : vector<4x10xf32>, vector<10x40xf32>, vector<4x40xf32> -> vector<4x40xf32>
    %311 = arith.addf %310, %206 : vector<4x40xf32>
    %312 = math.tanh %311 : vector<4x40xf32>
    %cst_66 = arith.constant 5.000000e-01 : f32
    %313 = vector.broadcast %cst_66 : f32 to vector<4x40xf32>
    %314 = arith.mulf %313, %312 : vector<4x40xf32>
    %cst_67 = arith.constant 5.000000e-01 : f32
    %315 = vector.broadcast %cst_67 : f32 to vector<4x40xf32>
    %316 = arith.addf %314, %315 : vector<4x40xf32>
    %317 = arith.select %13, %312, %316 : vector<4x40xi1>, vector<4x40xf32>
    %318 = vector.extract_strided_slice %317 {offsets = [0, 0], sizes = [4, 10], strides = [1, 1]} : vector<4x40xf32> to vector<4x10xf32>
    %319 = vector.extract_strided_slice %317 {offsets = [0, 10], sizes = [4, 10], strides = [1, 1]} : vector<4x40xf32> to vector<4x10xf32>
    %320 = vector.extract_strided_slice %317 {offsets = [0, 20], sizes = [4, 10], strides = [1, 1]} : vector<4x40xf32> to vector<4x10xf32>
    %321 = vector.extract_strided_slice %317 {offsets = [0, 30], sizes = [4, 10], strides = [1, 1]} : vector<4x40xf32> to vector<4x10xf32>
    %322 = arith.mulf %319, %307 : vector<4x10xf32>
    %323 = arith.mulf %318, %320 : vector<4x10xf32>
    %324 = arith.addf %322, %323 : vector<4x10xf32>
    %325 = math.tanh %324 : vector<4x10xf32>
    %326 = arith.mulf %321, %325 : vector<4x10xf32>
    %cst_68 = arith.constant dense<0.000000e+00> : vector<4x40xf32>
    %327 = tpu.matmul %326, %2, %cst_68 {dimension_numbers = #tpu.dot_dimension_numbers<[1], [0], [0], [1], [0, 0, 1, 1], [], []>} : vector<4x10xf32>, vector<10x40xf32>, vector<4x40xf32> -> vector<4x40xf32>
    %328 = arith.addf %327, %207 : vector<4x40xf32>
    %329 = math.tanh %328 : vector<4x40xf32>
    %cst_69 = arith.constant 5.000000e-01 : f32
    %330 = vector.broadcast %cst_69 : f32 to vector<4x40xf32>
    %331 = arith.mulf %330, %329 : vector<4x40xf32>
    %cst_70 = arith.constant 5.000000e-01 : f32
    %332 = vector.broadcast %cst_70 : f32 to vector<4x40xf32>
    %333 = arith.addf %331, %332 : vector<4x40xf32>
    %334 = arith.select %13, %329, %333 : vector<4x40xi1>, vector<4x40xf32>
    %335 = vector.extract_strided_slice %334 {offsets = [0, 0], sizes = [4, 10], strides = [1, 1]} : vector<4x40xf32> to vector<4x10xf32>
    %336 = vector.extract_strided_slice %334 {offsets = [0, 10], sizes = [4, 10], strides = [1, 1]} : vector<4x40xf32> to vector<4x10xf32>
    %337 = vector.extract_strided_slice %334 {offsets = [0, 20], sizes = [4, 10], strides = [1, 1]} : vector<4x40xf32> to vector<4x10xf32>
    %338 = vector.extract_strided_slice %334 {offsets = [0, 30], sizes = [4, 10], strides = [1, 1]} : vector<4x40xf32> to vector<4x10xf32>
    %339 = arith.mulf %336, %324 : vector<4x10xf32>
    %340 = arith.mulf %335, %337 : vector<4x10xf32>
    %341 = arith.addf %339, %340 : vector<4x10xf32>
    %342 = math.tanh %341 : vector<4x10xf32>
    %343 = arith.mulf %338, %342 : vector<4x10xf32>
    %cst_71 = arith.constant dense<0.000000e+00> : vector<4x64xf32>
    %344 = tpu.matmul %343, %4, %cst_71 {dimension_numbers = #tpu.dot_dimension_numbers<[1], [0], [0], [1], [0, 0, 1, 1], [], []>} : vector<4x10xf32>, vector<10x64xf32>, vector<4x64xf32> -> vector<4x64xf32>
    %345 = vector.broadcast %5 : vector<1x64xf32> to vector<4x64xf32>
    %346 = arith.addf %344, %345 : vector<4x64xf32>
    %cst_72 = arith.constant 0.000000e+00 : f32
    %347 = vector.broadcast %cst_72 : f32 to vector<4x64xf32>
    %348 = arith.maximumf %346, %347 : vector<4x64xf32>
    %cst_73 = arith.constant dense<0.000000e+00> : vector<4x2xf32>
    %349 = tpu.matmul %348, %6, %cst_73 {dimension_numbers = #tpu.dot_dimension_numbers<[1], [0], [0], [1], [0, 0, 1, 1], [], []>} : vector<4x64xf32>, vector<64x2xf32>, vector<4x2xf32> -> vector<4x2xf32>
    %350 = vector.broadcast %7 : vector<1x2xf32> to vector<4x2xf32>
    %351 = arith.addf %349, %350 : vector<4x2xf32>
    %c0_74 = arith.constant 0 : index
    %c0_75 = arith.constant 0 : index
    %352 = vector.load %arg2[%c0_74, %c0_75] : memref<4x2xf32, #tpu.memory_space<vmem>>, vector<4x2xf32>
    tpu.vector_store %arg2[%c0_74, %c0_75], %351 {strides = array<i32>} : memref<4x2xf32, #tpu.memory_space<vmem>>, vector<4x2xf32>,
    return
  }
}

</mosaic_0001>

<llo_original>
// kernel: rnn_forward.1
$region0: #{rnn_forward.1}
  #allocation0 [shape = 'u32[]', space=smem, size = 0x4, offset = 0x4, fixed_abs, tag = 'smem constant byte address 0x4 - core index']
  #allocation1 [shape = 'u32[144,128]{1,0:T(1,128)}', space=vmem, size = 0x12000, scoped, tag = 'internal scratch']
  %s0 = inlined_call_operand.vmem [shape: f32[32,40], index: 0, kind: input, shape index: {}]
  %s1 = inlined_call_operand.vmem [shape: f32[152,128], index: 1, kind: input, shape index: {}]
  %s2 = inlined_call_operand.vmem [shape: f32[4,2], index: 2, kind: output, shape index: {}]
  %s3 = sld [smem:[#allocation0]]
  $region18: #{rnn_forward.1} parent=0
    _
  %s5 = ssub.s32 1, %s3
  %s6 = scalar_select 0, %s5, %s3
  // Predicated region
  $region2: #{rnn_forward.1} parent=0 // pred_check
    _
  $region3: #{rnn_forward.1} parent=0 // pred_check_branch
    %8 = sbr.rel (0) target = $region5
  $region4: #{rnn_forward.1} parent=0 // pred_region
    _
  $region5: #{rnn_forward.1} parent=0 // pred_fallthru
    _
  // Predicated region
  $region6: #{rnn_forward.1} parent=0 // pred_check
    _
  $region7: #{rnn_forward.1} parent=0 // pred_check_branch
    %10 = sbr.rel (0) target = $region9
  $region8: #{rnn_forward.1} parent=0 // pred_region
    _
  $region9: #{rnn_forward.1} parent=0 // pred_fallthru
    _
  %v11 = vld [vmem:[%s1] sm:$0xff]
  %v12 = vld [vmem:[%s1 + $0x8] sm:$0x3]
  %v13 = vld [vmem:[%s1 + $0x10] sm:$0xff]
  %v14 = vld [vmem:[%s1 + $0x18] sm:$0x3]
  %v15 = vld [vmem:[%s1 + $0x20] sm:$0xff]
  %v16 = vld [vmem:[%s1 + $0x28] sm:$0x3]
  %v17 = vld [vmem:[%s1 + $0x30] sm:$0x1]
  %v18 = vld [vmem:[%s1 + $0x38] sm:$0xff]
  %v19 = vld [vmem:[%s1 + $0x40] sm:$0x3]
  %v20 = vld [vmem:[%s1 + $0x48] sm:$0x1]
  %v21 = vld [vmem:[%s1 + $0x50] sm:$0xff]
  %v22 = vld [vmem:[%s1 + $0x58] sm:$0xff]
  %v23 = vld [vmem:[%s1 + $0x60] sm:$0xff]
  %v24 = vld [vmem:[%s1 + $0x68] sm:$0xff]
  %v25 = vld [vmem:[%s1 + $0x70] sm:$0xff]
  %v26 = vld [vmem:[%s1 + $0x78] sm:$0xff]
  %v27 = vld [vmem:[%s1 + $0x80] sm:$0xff]
  %v28 = vld [vmem:[%s1 + $0x88] sm:$0xff]
  %v29 = vld [vmem:[%s1 + $0x90] sm:$0x1]
  %v30 = vlaneseq
  %v31 = vand.u32 %v30, 127
  %vm32 = vcmp.ge.s32.totalorder %v31, 20
  %vm33 = vcmp.lt.s32.totalorder %v31, 30
  %vm34 = vmand %vm32, %vm33
  %vm35 = vcmp.lt.s32.totalorder %v31, 0
  %v36 = vsub.s32 0, %v31
  %v37 = vsel %vm35, %v36, %v31
  %v38 = vmul.u32.u64.compose %v37, 3435973837
  %v39 = vextract.low.u32 %v38
  %v40 = vextract.high.u32 %v38
  %v41 = vshrl.u32 %v40, 3
  %v42 = vmul.u32 %v41, 10
  %v43 = vsub.s32 %v37, %v42
  %v44 = vsub.s32 0, %v43
  %v45 = vsel %vm35, %v44, %v43
  %vm46 = vcmp.ne.s32.totalorder %v45, 0
  %vm47 = vcmp.lt.s32.totalorder %v45, 0
  %vm48 = vmand %vm47, %vm46
  %v49 = vadd.s32 %v45, 10
  %v50 = vsel %vm48, %v49, %v45
  %vm51 = vcmp.lt.s32.totalorder %v50, 5
  %vm52 = vcmp.lt.s32.totalorder %v31, 5
  %v53 = vld [vmem:[%s0] sm:$0xf]
  %vm54 = vcmask 80896
  %v56 = vsel %vm54, 0.0, 0
  %vm58 = vcmask 1041408
  %v60 = vsel %vm58, %v12, 0
  %62 = vmatprep.subr.mxu0 0.0
  %63 = vmatpush1.msra.mxu0 %v11
  %64 = vmatprep.subr.mxu0 0.0
  %65 = vmatpush1.msra.mxu0 %v60
  %66 = vmatprep.subr.mxu0 0.0
  %67 = vmatpush1.msra.mxu0 0.0
  %68 = vmatprep.subr.mxu0 0.0
  %69 = vmatpush1.msra.mxu0 0.0
  %70 = vmatprep.subr.mxu0 0.0
  %71 = vmatpush1.msra.mxu0 0.0
  %72 = vmatprep.subr.mxu0 0.0
  %73 = vmatpush1.msra.mxu0 0.0
  %74 = vmatprep.subr.mxu0 0.0
  %75 = vmatpush1.msra.mxu0 0.0
  %76 = vmatprep.subr.mxu0 0.0
  %77 = vmatpush1.msra.mxu0 0.0
  %78 = vmatprep.subr.mxu0 0.0
  %79 = vmatpush1.msra.mxu0 0.0
  %80 = vmatprep.subr.mxu0 0.0
  %81 = vmatpush1.msra.mxu0 0.0
  %82 = vmatprep.subr.mxu0 0.0
  %83 = vmatpush1.msra.mxu0 0.0
  %84 = vmatprep.subr.mxu0 0.0
  %85 = vmatpush1.msra.mxu0 0.0
  %86 = vmatprep.subr.mxu0 0.0
  %87 = vmatpush1.msra.mxu0 0.0
  %88 = vmatprep.subr.mxu0 0.0
  %89 = vmatpush1.msra.mxu0 0.0
  %90 = vmatprep.subr.mxu0 0.0
  %91 = vmatpush1.msra.mxu0 0.0
  %92 = vmatprep.subr.mxu0 0.0
  %93 = vmatpush1.msra.mxu0 0.0
  %94 = vmatprep.subr.mxu0 0.0
  %95 = vmatpush1.msra.mxu0 0.0
  %96 = vmatprep.subr.mxu0 0.0
  %97 = vmatpush1.msra.mxu0 0.0
  %98 = vmatprep.subr.mxu0 0.0
  %99 = vmatpush1.msra.mxu0 0.0
  %100 = vmatprep.subr.mxu0 0.0
  %101 = vmatpush1.msra.mxu0 0.0
  %102 = vmatprep.subr.mxu0 0.0
  %103 = vmatpush1.msra.mxu0 0.0
  %104 = vmatprep.subr.mxu0 0.0
  %105 = vmatpush1.msra.mxu0 0.0
  %106 = vmatprep.subr.mxu0 0.0
  %107 = vmatpush1.msra.mxu0 0.0
  %108 = vmatprep.subr.mxu0 0.0
  %109 = vmatpush1.msra.mxu0 0.0
  %110 = vmatprep.subr.mxu0 0.0
  %111 = vmatpush1.msra.mxu0 0.0
  %112 = vmatprep.subr.mxu0 0.0
  %113 = vmatpush1.msra.mxu0 0.0
  %114 = vmatprep.subr.mxu0 0.0
  %115 = vmatpush1.msra.mxu0 0.0
  %116 = vmatprep.subr.mxu0 0.0
  %117 = vmatpush1.msra.mxu0 0.0
  %118 = vmatprep.subr.mxu0 0.0
  %119 = vmatpush1.msra.mxu0 0.0
  %120 = vmatprep.subr.mxu0 0.0
  %121 = vmatpush1.msra.mxu0 0.0
  %122 = vmatprep.subr.mxu0 0.0
  %123 = vmatpush1.msra.mxu0 0.0
  %124 = vmatprep.subr.mxu0 0.0
  %125 = vmatpush1.msra.mxu0 0.0
  %126 = vmatprep.mubr.f32.mxu0 0.0
  %127 = vmatmul.mubr.f32.gmra.mrb[0].mxu0 %v56
  %v128 = vpop.f32.mrb[0].mxu0
  %v129 = vadd.f32 %v53, %v128
  %v130 = vpop.f32.mrb[0].mxu0
  %131 = vdwg.mxu0
  %v132 = vtanh.pop %v129
  %v133 = vmul.f32 %v132, 0.5
  %v134 = vadd.f32 %v133, 0.5
  %v135 = vsel %vm34, %v132, %v134
  %v136 = vmul.f32 %v135, 0.0
  %138 = vrot.lane.b32.xlu0 %v135, 108
  %v139 = vpop.permute.xlu0 %138
  %v141 = vmul.f32 %v135, %v139
  %143 = vrot.lane.b32.xlu0 %v141, 10
  %v144 = vpop.permute.xlu0 %143
  %v146 = vadd.f32 %v136, %v144
  %v147 = vtanh.pop %v146
  %149 = vrot.lane.b32.xlu0 %v147, 20
  %v150 = vpop.permute.xlu0 %149
  %v152 = vmul.f32 %v135, %v150
  %v153 = vld [vmem:[%s0 + $0x4] sm:$0xf]
  %155 = vrot.lane.b32.xlu0 %v152, 98
  %v156 = vpop.permute.xlu0 %155
  %v157 = vsel %vm54, %v156, 0
  %159 = vmatprep.subr.mxu0 0.0
  %160 = vmatpush1.msra.mxu0 %v11
  %161 = vmatprep.subr.mxu0 0.0
  %162 = vmatpush1.msra.mxu0 %v60
  %163 = vmatprep.subr.mxu0 0.0
  %164 = vmatpush1.msra.mxu0 0.0
  %165 = vmatprep.subr.mxu0 0.0
  %166 = vmatpush1.msra.mxu0 0.0
  %167 = vmatprep.subr.mxu0 0.0
  %168 = vmatpush1.msra.mxu0 0.0
  %169 = vmatprep.subr.mxu0 0.0
  %170 = vmatpush1.msra.mxu0 0.0
  %171 = vmatprep.subr.mxu0 0.0
  %172 = vmatpush1.msra.mxu0 0.0
  %173 = vmatprep.subr.mxu0 0.0
  %174 = vmatpush1.msra.mxu0 0.0
  %175 = vmatprep.subr.mxu0 0.0
  %176 = vmatpush1.msra.mxu0 0.0
  %177 = vmatprep.subr.mxu0 0.0
  %178 = vmatpush1.msra.mxu0 0.0
  %179 = vmatprep.subr.mxu0 0.0
  %180 = vmatpush1.msra.mxu0 0.0
  %181 = vmatprep.subr.mxu0 0.0
  %182 = vmatpush1.msra.mxu0 0.0
  %183 = vmatprep.subr.mxu0 0.0
  %184 = vmatpush1.msra.mxu0 0.0
  %185 = vmatprep.subr.mxu0 0.0
  %186 = vmatpush1.msra.mxu0 0.0
  %187 = vmatprep.subr.mxu0 0.0
  %188 = vmatpush1.msra.mxu0 0.0
  %189 = vmatprep.subr.mxu0 0.0
  %190 = vmatpush1.msra.mxu0 0.0
  %191 = vmatprep.subr.mxu0 0.0
  %192 = vmatpush1.msra.mxu0 0.0
  %193 = vmatprep.subr.mxu0 0.0
  %194 = vmatpush1.msra.mxu0 0.0
  %195 = vmatprep.subr.mxu0 0.0
  %196 = vmatpush1.msra.mxu0 0.0
  %197 = vmatprep.subr.mxu0 0.0
  %198 = vmatpush1.msra.mxu0 0.0
  %199 = vmatprep.subr.mxu0 0.0
  %200 = vmatpush1.msra.mxu0 0.0
  %201 = vmatprep.subr.mxu0 0.0
  %202 = vmatpush1.msra.mxu0 0.0
  %203 = vmatprep.subr.mxu0 0.0
  %204 = vmatpush1.msra.mxu0 0.0
  %205 = vmatprep.subr.mxu0 0.0
  %206 = vmatpush1.msra.mxu0 0.0
  %207 = vmatprep.subr.mxu0 0.0
  %208 = vmatpush1.msra.mxu0 0.0
  %209 = vmatprep.subr.mxu0 0.0
  %210 = vmatpush1.msra.mxu0 0.0
  %211 = vmatprep.subr.mxu0 0.0
  %212 = vmatpush1.msra.mxu0 0.0
  %213 = vmatprep.subr.mxu0 0.0
  %214 = vmatpush1.msra.mxu0 0.0
  %215 = vmatprep.subr.mxu0 0.0
  %216 = vmatpush1.msra.mxu0 0.0
  %217 = vmatprep.subr.mxu0 0.0
  %218 = vmatpush1.msra.mxu0 0.0
  %219 = vmatprep.subr.mxu0 0.0
  %220 = vmatpush1.msra.mxu0 0.0
  %221 = vmatprep.subr.mxu0 0.0
  %222 = vmatpush1.msra.mxu0 0.0
  %223 = vmatprep.mubr.f32.mxu0 0.0
  %224 = vmatmul.mubr.f32.gmra.mrb[0].mxu0 %v157
  %v225 = vpop.f32.mrb[0].mxu0
  %v226 = vadd.f32 %v153, %v225
  %v227 = vpop.f32.mrb[0].mxu0
  %228 = vdwg.mxu0
  %v229 = vtanh.pop %v226
  %v230 = vmul.f32 %v229, 0.5
  %v231 = vadd.f32 %v230, 0.5
  %v232 = vsel %vm34, %v229, %v231
  %v233 = vmul.f32 %v232, %v146
  %235 = vrot.lane.b32.xlu0 %v232, 108
  %v236 = vpop.permute.xlu0 %235
  %v238 = vmul.f32 %v232, %v236
  %240 = vrot.lane.b32.xlu0 %v238, 10
  %v241 = vpop.permute.xlu0 %240
  %v243 = vadd.f32 %v233, %v241
  %v244 = vtanh.pop %v243
  %246 = vrot.lane.b32.xlu0 %v244, 20
  %v247 = vpop.permute.xlu0 %246
  %v249 = vmul.f32 %v232, %v247
  %v250 = vld [vmem:[%s0 + $0x8] sm:$0xf]
  %252 = vrot.lane.b32.xlu0 %v249, 98
  %v253 = vpop.permute.xlu0 %252
  %v254 = vsel %vm54, %v253, 0
  %256 = vmatprep.subr.mxu0 0.0
  %257 = vmatpush1.msra.mxu0 %v11
  %258 = vmatprep.subr.mxu0 0.0
  %259 = vmatpush1.msra.mxu0 %v60
  %260 = vmatprep.subr.mxu0 0.0
  %261 = vmatpush1.msra.mxu0 0.0
  %262 = vmatprep.subr.mxu0 0.0
  %263 = vmatpush1.msra.mxu0 0.0
  %264 = vmatprep.subr.mxu0 0.0
  %265 = vmatpush1.msra.mxu0 0.0
  %266 = vmatprep.subr.mxu0 0.0
  %267 = vmatpush1.msra.mxu0 0.0
  %268 = vmatprep.subr.mxu0 0.0
  %269 = vmatpush1.msra.mxu0 0.0
  %270 = vmatprep.subr.mxu0 0.0
  %271 = vmatpush1.msra.mxu0 0.0
  %272 = vmatprep.subr.mxu0 0.0
  %273 = vmatpush1.msra.mxu0 0.0
  %274 = vmatprep.subr.mxu0 0.0
  %275 = vmatpush1.msra.mxu0 0.0
  %276 = vmatprep.subr.mxu0 0.0
  %277 = vmatpush1.msra.mxu0 0.0
  %278 = vmatprep.subr.mxu0 0.0
  %279 = vmatpush1.msra.mxu0 0.0
  %280 = vmatprep.subr.mxu0 0.0
  %281 = vmatpush1.msra.mxu0 0.0
  %282 = vmatprep.subr.mxu0 0.0
  %283 = vmatpush1.msra.mxu0 0.0
  %284 = vmatprep.subr.mxu0 0.0
  %285 = vmatpush1.msra.mxu0 0.0
  %286 = vmatprep.subr.mxu0 0.0
  %287 = vmatpush1.msra.mxu0 0.0
  %288 = vmatprep.subr.mxu0 0.0
  %289 = vmatpush1.msra.mxu0 0.0
  %290 = vmatprep.subr.mxu0 0.0
  %291 = vmatpush1.msra.mxu0 0.0
  %292 = vmatprep.subr.mxu0 0.0
  %293 = vmatpush1.msra.mxu0 0.0
  %294 = vmatprep.subr.mxu0 0.0
  %295 = vmatpush1.msra.mxu0 0.0
  %296 = vmatprep.subr.mxu0 0.0
  %297 = vmatpush1.msra.mxu0 0.0
  %298 = vmatprep.subr.mxu0 0.0
  %299 = vmatpush1.msra.mxu0 0.0
  %300 = vmatprep.subr.mxu0 0.0
  %301 = vmatpush1.msra.mxu0 0.0
  %302 = vmatprep.subr.mxu0 0.0
  %303 = vmatpush1.msra.mxu0 0.0
  %304 = vmatprep.subr.mxu0 0.0
  %305 = vmatpush1.msra.mxu0 0.0
  %306 = vmatprep.subr.mxu0 0.0
  %307 = vmatpush1.msra.mxu0 0.0
  %308 = vmatprep.subr.mxu0 0.0
  %309 = vmatpush1.msra.mxu0 0.0
  %310 = vmatprep.subr.mxu0 0.0
  %311 = vmatpush1.msra.mxu0 0.0
  %312 = vmatprep.subr.mxu0 0.0
  %313 = vmatpush1.msra.mxu0 0.0
  %314 = vmatprep.subr.mxu0 0.0
  %315 = vmatpush1.msra.mxu0 0.0
  %316 = vmatprep.subr.mxu0 0.0
  %317 = vmatpush1.msra.mxu0 0.0
  %318 = vmatprep.subr.mxu0 0.0
  %319 = vmatpush1.msra.mxu0 0.0
  %320 = vmatprep.mubr.f32.mxu0 0.0
  %321 = vmatmul.mubr.f32.gmra.mrb[0].mxu0 %v254
  %v322 = vpop.f32.mrb[0].mxu0
  %v323 = vadd.f32 %v250, %v322
  %v324 = vpop.f32.mrb[0].mxu0
  %325 = vdwg.mxu0
  %v326 = vtanh.pop %v323
  %v327 = vmul.f32 %v326, 0.5
  %v328 = vadd.f32 %v327, 0.5
  %v329 = vsel %vm34, %v326, %v328
  %v330 = vmul.f32 %v329, %v243
  %332 = vrot.lane.b32.xlu0 %v329, 108
  %v333 = vpop.permute.xlu0 %332
  %v335 = vmul.f32 %v329, %v333
  %337 = vrot.lane.b32.xlu0 %v335, 10
  %v338 = vpop.permute.xlu0 %337
  %v340 = vadd.f32 %v330, %v338
  %v341 = vtanh.pop %v340
  %343 = vrot.lane.b32.xlu0 %v341, 20
  %v344 = vpop.permute.xlu0 %343
  %v346 = vmul.f32 %v329, %v344
  %v347 = vld [vmem:[%s0 + $0xc] sm:$0xf]
  %349 = vrot.lane.b32.xlu0 %v346, 98
  %v350 = vpop.permute.xlu0 %349
  %v351 = vsel %vm54, %v350, 0
  %353 = vmatprep.subr.mxu0 0.0
  %354 = vmatpush1.msra.mxu0 %v11
  %355 = vmatprep.subr.mxu0 0.0
  %356 = vmatpush1.msra.mxu0 %v60
  %357 = vmatprep.subr.mxu0 0.0
  %358 = vmatpush1.msra.mxu0 0.0
  %359 = vmatprep.subr.mxu0 0.0
  %360 = vmatpush1.msra.mxu0 0.0
  %361 = vmatprep.subr.mxu0 0.0
  %362 = vmatpush1.msra.mxu0 0.0
  %363 = vmatprep.subr.mxu0 0.0
  %364 = vmatpush1.msra.mxu0 0.0
  %365 = vmatprep.subr.mxu0 0.0
  %366 = vmatpush1.msra.mxu0 0.0
  %367 = vmatprep.subr.mxu0 0.0
  %368 = vmatpush1.msra.mxu0 0.0
  %369 = vmatprep.subr.mxu0 0.0
  %370 = vmatpush1.msra.mxu0 0.0
  %371 = vmatprep.subr.mxu0 0.0
  %372 = vmatpush1.msra.mxu0 0.0
  %373 = vmatprep.subr.mxu0 0.0
  %374 = vmatpush1.msra.mxu0 0.0
  %375 = vmatprep.subr.mxu0 0.0
  %376 = vmatpush1.msra.mxu0 0.0
  %377 = vmatprep.subr.mxu0 0.0
  %378 = vmatpush1.msra.mxu0 0.0
  %379 = vmatprep.subr.mxu0 0.0
  %380 = vmatpush1.msra.mxu0 0.0
  %381 = vmatprep.subr.mxu0 0.0
  %382 = vmatpush1.msra.mxu0 0.0
  %383 = vmatprep.subr.mxu0 0.0
  %384 = vmatpush1.msra.mxu0 0.0
  %385 = vmatprep.subr.mxu0 0.0
  %386 = vmatpush1.msra.mxu0 0.0
  %387 = vmatprep.subr.mxu0 0.0
  %388 = vmatpush1.msra.mxu0 0.0
  %389 = vmatprep.subr.mxu0 0.0
  %390 = vmatpush1.msra.mxu0 0.0
  %391 = vmatprep.subr.mxu0 0.0
  %392 = vmatpush1.msra.mxu0 0.0
  %393 = vmatprep.subr.mxu0 0.0
  %394 = vmatpush1.msra.mxu0 0.0
  %395 = vmatprep.subr.mxu0 0.0
  %396 = vmatpush1.msra.mxu0 0.0
  %397 = vmatprep.subr.mxu0 0.0
  %398 = vmatpush1.msra.mxu0 0.0
  %399 = vmatprep.subr.mxu0 0.0
  %400 = vmatpush1.msra.mxu0 0.0
  %401 = vmatprep.subr.mxu0 0.0
  %402 = vmatpush1.msra.mxu0 0.0
  %403 = vmatprep.subr.mxu0 0.0
  %404 = vmatpush1.msra.mxu0 0.0
  %405 = vmatprep.subr.mxu0 0.0
  %406 = vmatpush1.msra.mxu0 0.0
  %407 = vmatprep.subr.mxu0 0.0
  %408 = vmatpush1.msra.mxu0 0.0
  %409 = vmatprep.subr.mxu0 0.0
  %410 = vmatpush1.msra.mxu0 0.0
  %411 = vmatprep.subr.mxu0 0.0
  %412 = vmatpush1.msra.mxu0 0.0
  %413 = vmatprep.subr.mxu0 0.0
  %414 = vmatpush1.msra.mxu0 0.0
  %415 = vmatprep.subr.mxu0 0.0
  %416 = vmatpush1.msra.mxu0 0.0
  %417 = vmatprep.mubr.f32.mxu0 0.0
  %418 = vmatmul.mubr.f32.gmra.mrb[0].mxu0 %v351
  %v419 = vpop.f32.mrb[0].mxu0
  %v420 = vadd.f32 %v347, %v419
  %v421 = vpop.f32.mrb[0].mxu0
  %422 = vdwg.mxu0
  %v423 = vtanh.pop %v420
  %v424 = vmul.f32 %v423, 0.5
  %v425 = vadd.f32 %v424, 0.5
  %v426 = vsel %vm34, %v423, %v425
  %v427 = vmul.f32 %v426, %v340
  %429 = vrot.lane.b32.xlu0 %v426, 108
  %v430 = vpop.permute.xlu0 %429
  %v432 = vmul.f32 %v426, %v430
  %434 = vrot.lane.b32.xlu0 %v432, 10
  %v435 = vpop.permute.xlu0 %434
  %v437 = vadd.f32 %v427, %v435
  %v438 = vtanh.pop %v437
  %440 = vrot.lane.b32.xlu0 %v438, 20
  %v441 = vpop.permute.xlu0 %440
  %v443 = vmul.f32 %v426, %v441
  %v444 = vld [vmem:[%s0 + $0x10] sm:$0xf]
  %446 = vrot.lane.b32.xlu0 %v443, 98
  %v447 = vpop.permute.xlu0 %446
  %v448 = vsel %vm54, %v447, 0
  %450 = vmatprep.subr.mxu0 0.0
  %451 = vmatpush1.msra.mxu0 %v11
  %452 = vmatprep.subr.mxu0 0.0
  %453 = vmatpush1.msra.mxu0 %v60
  %454 = vmatprep.subr.mxu0 0.0
  %455 = vmatpush1.msra.mxu0 0.0
  %456 = vmatprep.subr.mxu0 0.0
  %457 = vmatpush1.msra.mxu0 0.0
  %458 = vmatprep.subr.mxu0 0.0
  %459 = vmatpush1.msra.mxu0 0.0
  %460 = vmatprep.subr.mxu0 0.0
  %461 = vmatpush1.msra.mxu0 0.0
  %462 = vmatprep.subr.mxu0 0.0
  %463 = vmatpush1.msra.mxu0 0.0
  %464 = vmatprep.subr.mxu0 0.0
  %465 = vmatpush1.msra.mxu0 0.0
  %466 = vmatprep.subr.mxu0 0.0
  %467 = vmatpush1.msra.mxu0 0.0
  %468 = vmatprep.subr.mxu0 0.0
  %469 = vmatpush1.msra.mxu0 0.0
  %470 = vmatprep.subr.mxu0 0.0
  %471 = vmatpush1.msra.mxu0 0.0
  %472 = vmatprep.subr.mxu0 0.0
  %473 = vmatpush1.msra.mxu0 0.0
  %474 = vmatprep.subr.mxu0 0.0
  %475 = vmatpush1.msra.mxu0 0.0
  %476 = vmatprep.subr.mxu0 0.0
  %477 = vmatpush1.msra.mxu0 0.0
  %478 = vmatprep.subr.mxu0 0.0
  %479 = vmatpush1.msra.mxu0 0.0
  %480 = vmatprep.subr.mxu0 0.0
  %481 = vmatpush1.msra.mxu0 0.0
  %482 = vmatprep.subr.mxu0 0.0
  %483 = vmatpush1.msra.mxu0 0.0
  %484 = vmatprep.subr.mxu0 0.0
  %485 = vmatpush1.msra.mxu0 0.0
  %486 = vmatprep.subr.mxu0 0.0
  %487 = vmatpush1.msra.mxu0 0.0
  %488 = vmatprep.subr.mxu0 0.0
  %489 = vmatpush1.msra.mxu0 0.0
  %490 = vmatprep.subr.mxu0 0.0
  %491 = vmatpush1.msra.mxu0 0.0
  %492 = vmatprep.subr.mxu0 0.0
  %493 = vmatpush1.msra.mxu0 0.0
  %494 = vmatprep.subr.mxu0 0.0
  %495 = vmatpush1.msra.mxu0 0.0
  %496 = vmatprep.subr.mxu0 0.0
  %497 = vmatpush1.msra.mxu0 0.0
  %498 = vmatprep.subr.mxu0 0.0
  %499 = vmatpush1.msra.mxu0 0.0
  %500 = vmatprep.subr.mxu0 0.0
  %501 = vmatpush1.msra.mxu0 0.0
  %502 = vmatprep.subr.mxu0 0.0
  %503 = vmatpush1.msra.mxu0 0.0
  %504 = vmatprep.subr.mxu0 0.0
  %505 = vmatpush1.msra.mxu0 0.0
  %506 = vmatprep.subr.mxu0 0.0
  %507 = vmatpush1.msra.mxu0 0.0
  %508 = vmatprep.subr.mxu0 0.0
  %509 = vmatpush1.msra.mxu0 0.0
  %510 = vmatprep.subr.mxu0 0.0
  %511 = vmatpush1.msra.mxu0 0.0
  %512 = vmatprep.subr.mxu0 0.0
  %513 = vmatpush1.msra.mxu0 0.0
  %514 = vmatprep.mubr.f32.mxu0 0.0
  %515 = vmatmul.mubr.f32.gmra.mrb[0].mxu0 %v448
  %v516 = vpop.f32.mrb[0].mxu0
  %v517 = vadd.f32 %v444, %v516
  %v518 = vpop.f32.mrb[0].mxu0
  %519 = vdwg.mxu0
  %v520 = vtanh.pop %v517
  %v521 = vmul.f32 %v520, 0.5
  %v522 = vadd.f32 %v521, 0.5
  %v523 = vsel %vm34, %v520, %v522
  %v524 = vmul.f32 %v523, %v437
  %526 = vrot.lane.b32.xlu0 %v523, 108
  %v527 = vpop.permute.xlu0 %526
  %v529 = vmul.f32 %v523, %v527
  %531 = vrot.lane.b32.xlu0 %v529, 10
  %v532 = vpop.permute.xlu0 %531
  %v534 = vadd.f32 %v524, %v532
  %v535 = vtanh.pop %v534
  %537 = vrot.lane.b32.xlu0 %v535, 20
  %v538 = vpop.permute.xlu0 %537
  %v540 = vmul.f32 %v523, %v538
  %v541 = vld [vmem:[%s0 + $0x14] sm:$0xf]
  %543 = vrot.lane.b32.xlu0 %v540, 98
  %v544 = vpop.permute.xlu0 %543
  %v545 = vsel %vm54, %v544, 0
  %547 = vmatprep.subr.mxu0 0.0
  %548 = vmatpush1.msra.mxu0 %v11
  %549 = vmatprep.subr.mxu0 0.0
  %550 = vmatpush1.msra.mxu0 %v60
  %551 = vmatprep.subr.mxu0 0.0
  %552 = vmatpush1.msra.mxu0 0.0
  %553 = vmatprep.subr.mxu0 0.0
  %554 = vmatpush1.msra.mxu0 0.0
  %555 = vmatprep.subr.mxu0 0.0
  %556 = vmatpush1.msra.mxu0 0.0
  %557 = vmatprep.subr.mxu0 0.0
  %558 = vmatpush1.msra.mxu0 0.0
  %559 = vmatprep.subr.mxu0 0.0
  %560 = vmatpush1.msra.mxu0 0.0
  %561 = vmatprep.subr.mxu0 0.0
  %562 = vmatpush1.msra.mxu0 0.0
  %563 = vmatprep.subr.mxu0 0.0
  %564 = vmatpush1.msra.mxu0 0.0
  %565 = vmatprep.subr.mxu0 0.0
  %566 = vmatpush1.msra.mxu0 0.0
  %567 = vmatprep.subr.mxu0 0.0
  %568 = vmatpush1.msra.mxu0 0.0
  %569 = vmatprep.subr.mxu0 0.0
  %570 = vmatpush1.msra.mxu0 0.0
  %571 = vmatprep.subr.mxu0 0.0
  %572 = vmatpush1.msra.mxu0 0.0
  %573 = vmatprep.subr.mxu0 0.0
  %574 = vmatpush1.msra.mxu0 0.0
  %575 = vmatprep.subr.mxu0 0.0
  %576 = vmatpush1.msra.mxu0 0.0
  %577 = vmatprep.subr.mxu0 0.0
  %578 = vmatpush1.msra.mxu0 0.0
  %579 = vmatprep.subr.mxu0 0.0
  %580 = vmatpush1.msra.mxu0 0.0
  %581 = vmatprep.subr.mxu0 0.0
  %582 = vmatpush1.msra.mxu0 0.0
  %583 = vmatprep.subr.mxu0 0.0
  %584 = vmatpush1.msra.mxu0 0.0
  %585 = vmatprep.subr.mxu0 0.0
  %586 = vmatpush1.msra.mxu0 0.0
  %587 = vmatprep.subr.mxu0 0.0
  %588 = vmatpush1.msra.mxu0 0.0
  %589 = vmatprep.subr.mxu0 0.0
  %590 = vmatpush1.msra.mxu0 0.0
  %591 = vmatprep.subr.mxu0 0.0
  %592 = vmatpush1.msra.mxu0 0.0
  %593 = vmatprep.subr.mxu0 0.0
  %594 = vmatpush1.msra.mxu0 0.0
  %595 = vmatprep.subr.mxu0 0.0
  %596 = vmatpush1.msra.mxu0 0.0
  %597 = vmatprep.subr.mxu0 0.0
  %598 = vmatpush1.msra.mxu0 0.0
  %599 = vmatprep.subr.mxu0 0.0
  %600 = vmatpush1.msra.mxu0 0.0
  %601 = vmatprep.subr.mxu0 0.0
  %602 = vmatpush1.msra.mxu0 0.0
  %603 = vmatprep.subr.mxu0 0.0
  %604 = vmatpush1.msra.mxu0 0.0
  %605 = vmatprep.subr.mxu0 0.0
  %606 = vmatpush1.msra.mxu0 0.0
  %607 = vmatprep.subr.mxu0 0.0
  %608 = vmatpush1.msra.mxu0 0.0
  %609 = vmatprep.subr.mxu0 0.0
  %610 = vmatpush1.msra.mxu0 0.0
  %611 = vmatprep.mubr.f32.mxu0 0.0
  %612 = vmatmul.mubr.f32.gmra.mrb[0].mxu0 %v545
  %v613 = vpop.f32.mrb[0].mxu0
  %v614 = vadd.f32 %v541, %v613
  %v615 = vpop.f32.mrb[0].mxu0
  %616 = vdwg.mxu0
  %v617 = vtanh.pop %v614
  %v618 = vmul.f32 %v617, 0.5
  %v619 = vadd.f32 %v618, 0.5
  %v620 = vsel %vm34, %v617, %v619
  %v621 = vmul.f32 %v620, %v534
  %623 = vrot.lane.b32.xlu0 %v620, 108
  %v624 = vpop.permute.xlu0 %623
  %v626 = vmul.f32 %v620, %v624
  %628 = vrot.lane.b32.xlu0 %v626, 10
  %v629 = vpop.permute.xlu0 %628
  %v631 = vadd.f32 %v621, %v629
  %v632 = vtanh.pop %v631
  %634 = vrot.lane.b32.xlu0 %v632, 20
  %v635 = vpop.permute.xlu0 %634
  %v637 = vmul.f32 %v620, %v635
  %v638 = vld [vmem:[%s0 + $0x18] sm:$0xf]
  %640 = vrot.lane.b32.xlu0 %v637, 98
  %v641 = vpop.permute.xlu0 %640
  %v642 = vsel %vm54, %v641, 0
  %644 = vmatprep.subr.mxu0 0.0
  %645 = vmatpush1.msra.mxu0 %v11
  %646 = vmatprep.subr.mxu0 0.0
  %647 = vmatpush1.msra.mxu0 %v60
  %648 = vmatprep.subr.mxu0 0.0
  %649 = vmatpush1.msra.mxu0 0.0
  %650 = vmatprep.subr.mxu0 0.0
  %651 = vmatpush1.msra.mxu0 0.0
  %652 = vmatprep.subr.mxu0 0.0
  %653 = vmatpush1.msra.mxu0 0.0
  %654 = vmatprep.subr.mxu0 0.0
  %655 = vmatpush1.msra.mxu0 0.0
  %656 = vmatprep.subr.mxu0 0.0
  %657 = vmatpush1.msra.mxu0 0.0
  %658 = vmatprep.subr.mxu0 0.0
  %659 = vmatpush1.msra.mxu0 0.0
  %660 = vmatprep.subr.mxu0 0.0
  %661 = vmatpush1.msra.mxu0 0.0
  %662 = vmatprep.subr.mxu0 0.0
  %663 = vmatpush1.msra.mxu0 0.0
  %664 = vmatprep.subr.mxu0 0.0
  %665 = vmatpush1.msra.mxu0 0.0
  %666 = vmatprep.subr.mxu0 0.0
  %667 = vmatpush1.msra.mxu0 0.0
  %668 = vmatprep.subr.mxu0 0.0
  %669 = vmatpush1.msra.mxu0 0.0
  %670 = vmatprep.subr.mxu0 0.0
  %671 = vmatpush1.msra.mxu0 0.0
  %672 = vmatprep.subr.mxu0 0.0
  %673 = vmatpush1.msra.mxu0 0.0
  %674 = vmatprep.subr.mxu0 0.0
  %675 = vmatpush1.msra.mxu0 0.0
  %676 = vmatprep.subr.mxu0 0.0
  %677 = vmatpush1.msra.mxu0 0.0
  %678 = vmatprep.subr.mxu0 0.0
  %679 = vmatpush1.msra.mxu0 0.0
  %680 = vmatprep.subr.mxu0 0.0
  %681 = vmatpush1.msra.mxu0 0.0
  %682 = vmatprep.subr.mxu0 0.0
  %683 = vmatpush1.msra.mxu0 0.0
  %684 = vmatprep.subr.mxu0 0.0
  %685 = vmatpush1.msra.mxu0 0.0
  %686 = vmatprep.subr.mxu0 0.0
  %687 = vmatpush1.msra.mxu0 0.0
  %688 = vmatprep.subr.mxu0 0.0
  %689 = vmatpush1.msra.mxu0 0.0
  %690 = vmatprep.subr.mxu0 0.0
  %691 = vmatpush1.msra.mxu0 0.0
  %692 = vmatprep.subr.mxu0 0.0
  %693 = vmatpush1.msra.mxu0 0.0
  %694 = vmatprep.subr.mxu0 0.0
  %695 = vmatpush1.msra.mxu0 0.0
  %696 = vmatprep.subr.mxu0 0.0
  %697 = vmatpush1.msra.mxu0 0.0
  %698 = vmatprep.subr.mxu0 0.0
  %699 = vmatpush1.msra.mxu0 0.0
  %700 = vmatprep.subr.mxu0 0.0
  %701 = vmatpush1.msra.mxu0 0.0
  %702 = vmatprep.subr.mxu0 0.0
  %703 = vmatpush1.msra.mxu0 0.0
  %704 = vmatprep.subr.mxu0 0.0
  %705 = vmatpush1.msra.mxu0 0.0
  %706 = vmatprep.subr.mxu0 0.0
  %707 = vmatpush1.msra.mxu0 0.0
  %708 = vmatprep.mubr.f32.mxu0 0.0
  %709 = vmatmul.mubr.f32.gmra.mrb[0].mxu0 %v642
  %v710 = vpop.f32.mrb[0].mxu0
  %v711 = vadd.f32 %v638, %v710
  %v712 = vpop.f32.mrb[0].mxu0
  %713 = vdwg.mxu0
  %v714 = vtanh.pop %v711
  %v715 = vmul.f32 %v714, 0.5
  %v716 = vadd.f32 %v715, 0.5
  %v717 = vsel %vm34, %v714, %v716
  %v718 = vmul.f32 %v717, %v631
  %720 = vrot.lane.b32.xlu0 %v717, 108
  %v721 = vpop.permute.xlu0 %720
  %v723 = vmul.f32 %v717, %v721
  %725 = vrot.lane.b32.xlu0 %v723, 10
  %v726 = vpop.permute.xlu0 %725
  %v728 = vadd.f32 %v718, %v726
  %v729 = vtanh.pop %v728
  %731 = vrot.lane.b32.xlu0 %v729, 20
  %v732 = vpop.permute.xlu0 %731
  %v734 = vmul.f32 %v717, %v732
  %v735 = vld [vmem:[%s0 + $0x1c] sm:$0xf]
  %737 = vrot.lane.b32.xlu0 %v734, 98
  %v738 = vpop.permute.xlu0 %737
  %v739 = vsel %vm54, %v738, 0
  %741 = vmatprep.subr.mxu0 0.0
  %742 = vmatpush1.msra.mxu0 %v11
  %743 = vmatprep.subr.mxu0 0.0
  %744 = vmatpush1.msra.mxu0 %v60
  %745 = vmatprep.subr.mxu0 0.0
  %746 = vmatpush1.msra.mxu0 0.0
  %747 = vmatprep.subr.mxu0 0.0
  %748 = vmatpush1.msra.mxu0 0.0
  %749 = vmatprep.subr.mxu0 0.0
  %750 = vmatpush1.msra.mxu0 0.0
  %751 = vmatprep.subr.mxu0 0.0
  %752 = vmatpush1.msra.mxu0 0.0
  %753 = vmatprep.subr.mxu0 0.0
  %754 = vmatpush1.msra.mxu0 0.0
  %755 = vmatprep.subr.mxu0 0.0
  %756 = vmatpush1.msra.mxu0 0.0
  %757 = vmatprep.subr.mxu0 0.0
  %758 = vmatpush1.msra.mxu0 0.0
  %759 = vmatprep.subr.mxu0 0.0
  %760 = vmatpush1.msra.mxu0 0.0
  %761 = vmatprep.subr.mxu0 0.0
  %762 = vmatpush1.msra.mxu0 0.0
  %763 = vmatprep.subr.mxu0 0.0
  %764 = vmatpush1.msra.mxu0 0.0
  %765 = vmatprep.subr.mxu0 0.0
  %766 = vmatpush1.msra.mxu0 0.0
  %767 = vmatprep.subr.mxu0 0.0
  %768 = vmatpush1.msra.mxu0 0.0
  %769 = vmatprep.subr.mxu0 0.0
  %770 = vmatpush1.msra.mxu0 0.0
  %771 = vmatprep.subr.mxu0 0.0
  %772 = vmatpush1.msra.mxu0 0.0
  %773 = vmatprep.subr.mxu0 0.0
  %774 = vmatpush1.msra.mxu0 0.0
  %775 = vmatprep.subr.mxu0 0.0
  %776 = vmatpush1.msra.mxu0 0.0
  %777 = vmatprep.subr.mxu0 0.0
  %778 = vmatpush1.msra.mxu0 0.0
  %779 = vmatprep.subr.mxu0 0.0
  %780 = vmatpush1.msra.mxu0 0.0
  %781 = vmatprep.subr.mxu0 0.0
  %782 = vmatpush1.msra.mxu0 0.0
  %783 = vmatprep.subr.mxu0 0.0
  %784 = vmatpush1.msra.mxu0 0.0
  %785 = vmatprep.subr.mxu0 0.0
  %786 = vmatpush1.msra.mxu0 0.0
  %787 = vmatprep.subr.mxu0 0.0
  %788 = vmatpush1.msra.mxu0 0.0
  %789 = vmatprep.subr.mxu0 0.0
  %790 = vmatpush1.msra.mxu0 0.0
  %791 = vmatprep.subr.mxu0 0.0
  %792 = vmatpush1.msra.mxu0 0.0
  %793 = vmatprep.subr.mxu0 0.0
  %794 = vmatpush1.msra.mxu0 0.0
  %795 = vmatprep.subr.mxu0 0.0
  %796 = vmatpush1.msra.mxu0 0.0
  %797 = vmatprep.subr.mxu0 0.0
  %798 = vmatpush1.msra.mxu0 0.0
  %799 = vmatprep.subr.mxu0 0.0
  %800 = vmatpush1.msra.mxu0 0.0
  %801 = vmatprep.subr.mxu0 0.0
  %802 = vmatpush1.msra.mxu0 0.0
  %803 = vmatprep.subr.mxu0 0.0
  %804 = vmatpush1.msra.mxu0 0.0
  %805 = vmatprep.mubr.f32.mxu0 0.0
  %806 = vmatmul.mubr.f32.gmra.mrb[0].mxu0 %v739
  %v807 = vpop.f32.mrb[0].mxu0
  %v808 = vadd.f32 %v735, %v807
  %v809 = vpop.f32.mrb[0].mxu0
  %810 = vdwg.mxu0
  %v811 = vtanh.pop %v808
  %v812 = vmul.f32 %v811, 0.5
  %v813 = vadd.f32 %v812, 0.5
  %v814 = vsel %vm34, %v811, %v813
  %v815 = vmul.f32 %v814, %v728
  %817 = vrot.lane.b32.xlu0 %v814, 108
  %v818 = vpop.permute.xlu0 %817
  %v820 = vmul.f32 %v814, %v818
  %822 = vrot.lane.b32.xlu0 %v820, 10
  %v823 = vpop.permute.xlu0 %822
  %v825 = vadd.f32 %v815, %v823
  %v826 = vtanh.pop %v825
  %828 = vrot.lane.b32.xlu0 %v826, 20
  %v829 = vpop.permute.xlu0 %828
  %v831 = vmul.f32 %v814, %v829
  %834 = vrot.lane.b32.xlu0 %v831, 98
  %v835 = vpop.permute.xlu0 %834
  %v837 = vsel %vm52, %v156, %v835
  %v840 = vsel %vm52, %v253, %v738
  %v843 = vsel %vm52, %v350, %v641
  %v846 = vsel %vm52, %v447, %v544
  %v847 = vsel %vm52, %v544, %v447
  %v848 = vsel %vm52, %v641, %v350
  %v849 = vsel %vm52, %v738, %v253
  %v850 = vsel %vm52, %v835, %v156
  %v852 = vrot.slane %v840, 4
  %v855 = vrot.slane %v846, 4
  %v858 = vrot.slane %v848, 4
  %v861 = vrot.slane %v850, 4
  %vm863 = vcmask 1043456
  %v864 = vsel %vm863, %v837, %v852
  %v865 = vsel %vm863, %v843, %v855
  %v866 = vsel %vm863, %v847, %v858
  %v867 = vsel %vm863, %v849, %v861
  %v868 = vlaneseq
  %v869 = vshrl.u32 %v868, 7
  %v870 = vsub.s32 0, %v869
  %v871 = vrot.slane %v17, %v870
  %v873 = vsel %vm54, %v864, 0
  %v876 = vsel %vm54, %v865, 0
  %v879 = vsel %vm54, %v866, 0
  %v882 = vsel %vm54, %v867, 0
  %v885 = vsel %vm58, %v14, 0
  %887 = vmatprep.subr.mxu0 0.0
  %888 = vmatpush1.msra.mxu0 %v13
  %889 = vmatprep.subr.mxu0 0.0
  %890 = vmatpush1.msra.mxu0 %v885
  %891 = vmatprep.subr.mxu0 0.0
  %892 = vmatpush1.msra.mxu0 0.0
  %893 = vmatprep.subr.mxu0 0.0
  %894 = vmatpush1.msra.mxu0 0.0
  %895 = vmatprep.subr.mxu0 0.0
  %896 = vmatpush1.msra.mxu0 0.0
  %897 = vmatprep.subr.mxu0 0.0
  %898 = vmatpush1.msra.mxu0 0.0
  %899 = vmatprep.subr.mxu0 0.0
  %900 = vmatpush1.msra.mxu0 0.0
  %901 = vmatprep.subr.mxu0 0.0
  %902 = vmatpush1.msra.mxu0 0.0
  %903 = vmatprep.subr.mxu0 0.0
  %904 = vmatpush1.msra.mxu0 0.0
  %905 = vmatprep.subr.mxu0 0.0
  %906 = vmatpush1.msra.mxu0 0.0
  %907 = vmatprep.subr.mxu0 0.0
  %908 = vmatpush1.msra.mxu0 0.0
  %909 = vmatprep.subr.mxu0 0.0
  %910 = vmatpush1.msra.mxu0 0.0
  %911 = vmatprep.subr.mxu0 0.0
  %912 = vmatpush1.msra.mxu0 0.0
  %913 = vmatprep.subr.mxu0 0.0
  %914 = vmatpush1.msra.mxu0 0.0
  %915 = vmatprep.subr.mxu0 0.0
  %916 = vmatpush1.msra.mxu0 0.0
  %917 = vmatprep.subr.mxu0 0.0
  %918 = vmatpush1.msra.mxu0 0.0
  %919 = vmatprep.subr.mxu0 0.0
  %920 = vmatpush1.msra.mxu0 0.0
  %921 = vmatprep.subr.mxu0 0.0
  %922 = vmatpush1.msra.mxu0 0.0
  %923 = vmatprep.subr.mxu0 0.0
  %924 = vmatpush1.msra.mxu0 0.0
  %925 = vmatprep.subr.mxu0 0.0
  %926 = vmatpush1.msra.mxu0 0.0
  %927 = vmatprep.subr.mxu0 0.0
  %928 = vmatpush1.msra.mxu0 0.0
  %929 = vmatprep.subr.mxu0 0.0
  %930 = vmatpush1.msra.mxu0 0.0
  %931 = vmatprep.subr.mxu0 0.0
  %932 = vmatpush1.msra.mxu0 0.0
  %933 = vmatprep.subr.mxu0 0.0
  %934 = vmatpush1.msra.mxu0 0.0
  %935 = vmatprep.subr.mxu0 0.0
  %936 = vmatpush1.msra.mxu0 0.0
  %937 = vmatprep.subr.mxu0 0.0
  %938 = vmatpush1.msra.mxu0 0.0
  %939 = vmatprep.subr.mxu0 0.0
  %940 = vmatpush1.msra.mxu0 0.0
  %941 = vmatprep.subr.mxu0 0.0
  %942 = vmatpush1.msra.mxu0 0.0
  %943 = vmatprep.subr.mxu0 0.0
  %944 = vmatpush1.msra.mxu0 0.0
  %945 = vmatprep.subr.mxu0 0.0
  %946 = vmatpush1.msra.mxu0 0.0
  %947 = vmatprep.subr.mxu0 0.0
  %948 = vmatpush1.msra.mxu0 0.0
  %949 = vmatprep.subr.mxu0 0.0
  %950 = vmatpush1.msra.mxu0 0.0
  %951 = vmatprep.mubr.f32.mxu0 0.0
  %952 = vmatmul.mubr.f32.gmra.mrb[0].mxu0 %v873
  %v953 = vpop.f32.mrb[0].mxu0
  %v954 = vadd.f32 %v871, %v953
  %v955 = vpop.f32.mrb[0].mxu0
  %956 = vmatprep.mubr.f32.mxu0 0.0
  %957 = vmatmul.mubr.f32.gmra.mrb[0].mxu0 %v876
  %v958 = vpop.f32.mrb[0].mxu0
  %v959 = vadd.f32 %v871, %v958
  %v960 = vpop.f32.mrb[0].mxu0
  %961 = vmatprep.mubr.f32.mxu0 0.0
  %962 = vmatmul.mubr.f32.gmra.mrb[0].mxu0 %v879
  %v963 = vpop.f32.mrb[0].mxu0
  %v964 = vadd.f32 %v871, %v963
  %v965 = vpop.f32.mrb[0].mxu0
  %966 = vmatprep.mubr.f32.mxu0 0.0
  %967 = vmatmul.mubr.f32.gmra.mrb[0].mxu0 %v882
  %v968 = vpop.f32.mrb[0].mxu0
  %v969 = vadd.f32 %v871, %v968
  %v970 = vpop.f32.mrb[0].mxu0
  %971 = vdwg.mxu0
  %v973 = vrot.slane %v969, 4
  %v975 = vsel %vm51, %v954, %v973
  %v977 = vrot.slane %v964, 4
  %v979 = vsel %vm51, %v959, %v977
  %v981 = vrot.slane %v959, 4
  %v983 = vsel %vm51, %v964, %v981
  %v985 = vrot.slane %v954, 4
  %v987 = vsel %vm51, %v969, %v985
  %v989 = vsel %vm58, %v16, 0
  %991 = vmatprep.subr.mxu0 0.0
  %992 = vmatpush1.msra.mxu0 %v15
  %993 = vmatprep.subr.mxu0 0.0
  %994 = vmatpush1.msra.mxu0 %v989
  %995 = vmatprep.subr.mxu0 0.0
  %996 = vmatpush1.msra.mxu0 0.0
  %997 = vmatprep.subr.mxu0 0.0
  %998 = vmatpush1.msra.mxu0 0.0
  %999 = vmatprep.subr.mxu0 0.0
  %1000 = vmatpush1.msra.mxu0 0.0
  %1001 = vmatprep.subr.mxu0 0.0
  %1002 = vmatpush1.msra.mxu0 0.0
  %1003 = vmatprep.subr.mxu0 0.0
  %1004 = vmatpush1.msra.mxu0 0.0
  %1005 = vmatprep.subr.mxu0 0.0
  %1006 = vmatpush1.msra.mxu0 0.0
  %1007 = vmatprep.subr.mxu0 0.0
  %1008 = vmatpush1.msra.mxu0 0.0
  %1009 = vmatprep.subr.mxu0 0.0
  %1010 = vmatpush1.msra.mxu0 0.0
  %1011 = vmatprep.subr.mxu0 0.0
  %1012 = vmatpush1.msra.mxu0 0.0
  %1013 = vmatprep.subr.mxu0 0.0
  %1014 = vmatpush1.msra.mxu0 0.0
  %1015 = vmatprep.subr.mxu0 0.0
  %1016 = vmatpush1.msra.mxu0 0.0
  %1017 = vmatprep.subr.mxu0 0.0
  %1018 = vmatpush1.msra.mxu0 0.0
  %1019 = vmatprep.subr.mxu0 0.0
  %1020 = vmatpush1.msra.mxu0 0.0
  %1021 = vmatprep.subr.mxu0 0.0
  %1022 = vmatpush1.msra.mxu0 0.0
  %1023 = vmatprep.subr.mxu0 0.0
  %1024 = vmatpush1.msra.mxu0 0.0
  %1025 = vmatprep.subr.mxu0 0.0
  %1026 = vmatpush1.msra.mxu0 0.0
  %1027 = vmatprep.subr.mxu0 0.0
  %1028 = vmatpush1.msra.mxu0 0.0
  %1029 = vmatprep.subr.mxu0 0.0
  %1030 = vmatpush1.msra.mxu0 0.0
  %1031 = vmatprep.subr.mxu0 0.0
  %1032 = vmatpush1.msra.mxu0 0.0
  %1033 = vmatprep.subr.mxu0 0.0
  %1034 = vmatpush1.msra.mxu0 0.0
  %1035 = vmatprep.subr.mxu0 0.0
  %1036 = vmatpush1.msra.mxu0 0.0
  %1037 = vmatprep.subr.mxu0 0.0
  %1038 = vmatpush1.msra.mxu0 0.0
  %1039 = vmatprep.subr.mxu0 0.0
  %1040 = vmatpush1.msra.mxu0 0.0
  %1041 = vmatprep.subr.mxu0 0.0
  %1042 = vmatpush1.msra.mxu0 0.0
  %1043 = vmatprep.subr.mxu0 0.0
  %1044 = vmatpush1.msra.mxu0 0.0
  %1045 = vmatprep.subr.mxu0 0.0
  %1046 = vmatpush1.msra.mxu0 0.0
  %1047 = vmatprep.subr.mxu0 0.0
  %1048 = vmatpush1.msra.mxu0 0.0
  %1049 = vmatprep.subr.mxu0 0.0
  %1050 = vmatpush1.msra.mxu0 0.0
  %1051 = vmatprep.subr.mxu0 0.0
  %1052 = vmatpush1.msra.mxu0 0.0
  %1053 = vmatprep.subr.mxu0 0.0
  %1054 = vmatpush1.msra.mxu0 0.0
  %1055 = vmatprep.mubr.f32.mxu0 0.0
  %1056 = vmatmul.mubr.f32.gmra.mrb[0].mxu0 %v56
  %v1057 = vpop.f32.mrb[0].mxu0
  %v1058 = vadd.f32 %v975, %v1057
  %v1059 = vpop.f32.mrb[0].mxu0
  %1060 = vdwg.mxu0
  %v1061 = vtanh.pop %v1058
  %v1062 = vmul.f32 %v1061, 0.5
  %v1063 = vadd.f32 %v1062, 0.5
  %v1064 = vsel %vm34, %v1061, %v1063
  %v1065 = vmul.f32 %v1064, 0.0
  %1067 = vrot.lane.b32.xlu0 %v1064, 108
  %v1068 = vpop.permute.xlu0 %1067
  %v1070 = vmul.f32 %v1064, %v1068
  %1072 = vrot.lane.b32.xlu0 %v1070, 10
  %v1073 = vpop.permute.xlu0 %1072
  %v1075 = vadd.f32 %v1065, %v1073
  %v1076 = vtanh.pop %v1075
  %1078 = vrot.lane.b32.xlu0 %v1076, 20
  %v1079 = vpop.permute.xlu0 %1078
  %v1081 = vmul.f32 %v1064, %v1079
  %1083 = vrot.lane.b32.xlu0 %v1081, 98
  %v1084 = vpop.permute.xlu0 %1083
  %v1086 = vrot.slane %v975, 4
  %v1088 = vsel %vm54, %v1084, 0
  %1090 = vmatprep.subr.mxu0 0.0
  %1091 = vmatpush1.msra.mxu0 %v15
  %1092 = vmatprep.subr.mxu0 0.0
  %1093 = vmatpush1.msra.mxu0 %v989
  %1094 = vmatprep.subr.mxu0 0.0
  %1095 = vmatpush1.msra.mxu0 0.0
  %1096 = vmatprep.subr.mxu0 0.0
  %1097 = vmatpush1.msra.mxu0 0.0
  %1098 = vmatprep.subr.mxu0 0.0
  %1099 = vmatpush1.msra.mxu0 0.0
  %1100 = vmatprep.subr.mxu0 0.0
  %1101 = vmatpush1.msra.mxu0 0.0
  %1102 = vmatprep.subr.mxu0 0.0
  %1103 = vmatpush1.msra.mxu0 0.0
  %1104 = vmatprep.subr.mxu0 0.0
  %1105 = vmatpush1.msra.mxu0 0.0
  %1106 = vmatprep.subr.mxu0 0.0
  %1107 = vmatpush1.msra.mxu0 0.0
  %1108 = vmatprep.subr.mxu0 0.0
  %1109 = vmatpush1.msra.mxu0 0.0
  %1110 = vmatprep.subr.mxu0 0.0
  %1111 = vmatpush1.msra.mxu0 0.0
  %1112 = vmatprep.subr.mxu0 0.0
  %1113 = vmatpush1.msra.mxu0 0.0
  %1114 = vmatprep.subr.mxu0 0.0
  %1115 = vmatpush1.msra.mxu0 0.0
  %1116 = vmatprep.subr.mxu0 0.0
  %1117 = vmatpush1.msra.mxu0 0.0
  %1118 = vmatprep.subr.mxu0 0.0
  %1119 = vmatpush1.msra.mxu0 0.0
  %1120 = vmatprep.subr.mxu0 0.0
  %1121 = vmatpush1.msra.mxu0 0.0
  %1122 = vmatprep.subr.mxu0 0.0
  %1123 = vmatpush1.msra.mxu0 0.0
  %1124 = vmatprep.subr.mxu0 0.0
  %1125 = vmatpush1.msra.mxu0 0.0
  %1126 = vmatprep.subr.mxu0 0.0
  %1127 = vmatpush1.msra.mxu0 0.0
  %1128 = vmatprep.subr.mxu0 0.0
  %1129 = vmatpush1.msra.mxu0 0.0
  %1130 = vmatprep.subr.mxu0 0.0
  %1131 = vmatpush1.msra.mxu0 0.0
  %1132 = vmatprep.subr.mxu0 0.0
  %1133 = vmatpush1.msra.mxu0 0.0
  %1134 = vmatprep.subr.mxu0 0.0
  %1135 = vmatpush1.msra.mxu0 0.0
  %1136 = vmatprep.subr.mxu0 0.0
  %1137 = vmatpush1.msra.mxu0 0.0
  %1138 = vmatprep.subr.mxu0 0.0
  %1139 = vmatpush1.msra.mxu0 0.0
  %1140 = vmatprep.subr.mxu0 0.0
  %1141 = vmatpush1.msra.mxu0 0.0
  %1142 = vmatprep.subr.mxu0 0.0
  %1143 = vmatpush1.msra.mxu0 0.0
  %1144 = vmatprep.subr.mxu0 0.0
  %1145 = vmatpush1.msra.mxu0 0.0
  %1146 = vmatprep.subr.mxu0 0.0
  %1147 = vmatpush1.msra.mxu0 0.0
  %1148 = vmatprep.subr.mxu0 0.0
  %1149 = vmatpush1.msra.mxu0 0.0
  %1150 = vmatprep.subr.mxu0 0.0
  %1151 = vmatpush1.msra.mxu0 0.0
  %1152 = vmatprep.subr.mxu0 0.0
  %1153 = vmatpush1.msra.mxu0 0.0
  %1154 = vmatprep.mubr.f32.mxu0 0.0
  %1155 = vmatmul.mubr.f32.gmra.mrb[0].mxu0 %v1088
  %v1156 = vpop.f32.mrb[0].mxu0
  %v1157 = vadd.f32 %v1086, %v1156
  %v1158 = vpop.f32.mrb[0].mxu0
  %1159 = vdwg.mxu0
  %v1160 = vtanh.pop %v1157
  %v1161 = vmul.f32 %v1160, 0.5
  %v1162 = vadd.f32 %v1161, 0.5
  %v1163 = vsel %vm34, %v1160, %v1162
  %v1164 = vmul.f32 %v1163, %v1075
  %1166 = vrot.lane.b32.xlu0 %v1163, 108
  %v1167 = vpop.permute.xlu0 %1166
  %v1169 = vmul.f32 %v1163, %v1167
  %1171 = vrot.lane.b32.xlu0 %v1169, 10
  %v1172 = vpop.permute.xlu0 %1171
  %v1174 = vadd.f32 %v1164, %v1172
  %v1175 = vtanh.pop %v1174
  %1177 = vrot.lane.b32.xlu0 %v1175, 20
  %v1178 = vpop.permute.xlu0 %1177
  %v1180 = vmul.f32 %v1163, %v1178
  %1182 = vrot.lane.b32.xlu0 %v1180, 98
  %v1183 = vpop.permute.xlu0 %1182
  %v1184 = vsel %vm54, %v1183, 0
  %1186 = vmatprep.subr.mxu0 0.0
  %1187 = vmatpush1.msra.mxu0 %v15
  %1188 = vmatprep.subr.mxu0 0.0
  %1189 = vmatpush1.msra.mxu0 %v989
  %1190 = vmatprep.subr.mxu0 0.0
  %1191 = vmatpush1.msra.mxu0 0.0
  %1192 = vmatprep.subr.mxu0 0.0
  %1193 = vmatpush1.msra.mxu0 0.0
  %1194 = vmatprep.subr.mxu0 0.0
  %1195 = vmatpush1.msra.mxu0 0.0
  %1196 = vmatprep.subr.mxu0 0.0
  %1197 = vmatpush1.msra.mxu0 0.0
  %1198 = vmatprep.subr.mxu0 0.0
  %1199 = vmatpush1.msra.mxu0 0.0
  %1200 = vmatprep.subr.mxu0 0.0
  %1201 = vmatpush1.msra.mxu0 0.0
  %1202 = vmatprep.subr.mxu0 0.0
  %1203 = vmatpush1.msra.mxu0 0.0
  %1204 = vmatprep.subr.mxu0 0.0
  %1205 = vmatpush1.msra.mxu0 0.0
  %1206 = vmatprep.subr.mxu0 0.0
  %1207 = vmatpush1.msra.mxu0 0.0
  %1208 = vmatprep.subr.mxu0 0.0
  %1209 = vmatpush1.msra.mxu0 0.0
  %1210 = vmatprep.subr.mxu0 0.0
  %1211 = vmatpush1.msra.mxu0 0.0
  %1212 = vmatprep.subr.mxu0 0.0
  %1213 = vmatpush1.msra.mxu0 0.0
  %1214 = vmatprep.subr.mxu0 0.0
  %1215 = vmatpush1.msra.mxu0 0.0
  %1216 = vmatprep.subr.mxu0 0.0
  %1217 = vmatpush1.msra.mxu0 0.0
  %1218 = vmatprep.subr.mxu0 0.0
  %1219 = vmatpush1.msra.mxu0 0.0
  %1220 = vmatprep.subr.mxu0 0.0
  %1221 = vmatpush1.msra.mxu0 0.0
  %1222 = vmatprep.subr.mxu0 0.0
  %1223 = vmatpush1.msra.mxu0 0.0
  %1224 = vmatprep.subr.mxu0 0.0
  %1225 = vmatpush1.msra.mxu0 0.0
  %1226 = vmatprep.subr.mxu0 0.0
  %1227 = vmatpush1.msra.mxu0 0.0
  %1228 = vmatprep.subr.mxu0 0.0
  %1229 = vmatpush1.msra.mxu0 0.0
  %1230 = vmatprep.subr.mxu0 0.0
  %1231 = vmatpush1.msra.mxu0 0.0
  %1232 = vmatprep.subr.mxu0 0.0
  %1233 = vmatpush1.msra.mxu0 0.0
  %1234 = vmatprep.subr.mxu0 0.0
  %1235 = vmatpush1.msra.mxu0 0.0
  %1236 = vmatprep.subr.mxu0 0.0
  %1237 = vmatpush1.msra.mxu0 0.0
  %1238 = vmatprep.subr.mxu0 0.0
  %1239 = vmatpush1.msra.mxu0 0.0
  %1240 = vmatprep.subr.mxu0 0.0
  %1241 = vmatpush1.msra.mxu0 0.0
  %1242 = vmatprep.subr.mxu0 0.0
  %1243 = vmatpush1.msra.mxu0 0.0
  %1244 = vmatprep.subr.mxu0 0.0
  %1245 = vmatpush1.msra.mxu0 0.0
  %1246 = vmatprep.subr.mxu0 0.0
  %1247 = vmatpush1.msra.mxu0 0.0
  %1248 = vmatprep.subr.mxu0 0.0
  %1249 = vmatpush1.msra.mxu0 0.0
  %1250 = vmatprep.mubr.f32.mxu0 0.0
  %1251 = vmatmul.mubr.f32.gmra.mrb[0].mxu0 %v1184
  %v1252 = vpop.f32.mrb[0].mxu0
  %v1253 = vadd.f32 %v979, %v1252
  %v1254 = vpop.f32.mrb[0].mxu0
  %1255 = vdwg.mxu0
  %v1256 = vtanh.pop %v1253
  %v1257 = vmul.f32 %v1256, 0.5
  %v1258 = vadd.f32 %v1257, 0.5
  %v1259 = vsel %vm34, %v1256, %v1258
  %v1260 = vmul.f32 %v1259, %v1174
  %1262 = vrot.lane.b32.xlu0 %v1259, 108
  %v1263 = vpop.permute.xlu0 %1262
  %v1265 = vmul.f32 %v1259, %v1263
  %1267 = vrot.lane.b32.xlu0 %v1265, 10
  %v1268 = vpop.permute.xlu0 %1267
  %v1270 = vadd.f32 %v1260, %v1268
  %v1271 = vtanh.pop %v1270
  %1273 = vrot.lane.b32.xlu0 %v1271, 20
  %v1274 = vpop.permute.xlu0 %1273
  %v1276 = vmul.f32 %v1259, %v1274
  %1278 = vrot.lane.b32.xlu0 %v1276, 98
  %v1279 = vpop.permute.xlu0 %1278
  %v1281 = vrot.slane %v979, 4
  %v1283 = vsel %vm54, %v1279, 0
  %1285 = vmatprep.subr.mxu0 0.0
  %1286 = vmatpush1.msra.mxu0 %v15
  %1287 = vmatprep.subr.mxu0 0.0
  %1288 = vmatpush1.msra.mxu0 %v989
  %1289 = vmatprep.subr.mxu0 0.0
  %1290 = vmatpush1.msra.mxu0 0.0
  %1291 = vmatprep.subr.mxu0 0.0
  %1292 = vmatpush1.msra.mxu0 0.0
  %1293 = vmatprep.subr.mxu0 0.0
  %1294 = vmatpush1.msra.mxu0 0.0
  %1295 = vmatprep.subr.mxu0 0.0
  %1296 = vmatpush1.msra.mxu0 0.0
  %1297 = vmatprep.subr.mxu0 0.0
  %1298 = vmatpush1.msra.mxu0 0.0
  %1299 = vmatprep.subr.mxu0 0.0
  %1300 = vmatpush1.msra.mxu0 0.0
  %1301 = vmatprep.subr.mxu0 0.0
  %1302 = vmatpush1.msra.mxu0 0.0
  %1303 = vmatprep.subr.mxu0 0.0
  %1304 = vmatpush1.msra.mxu0 0.0
  %1305 = vmatprep.subr.mxu0 0.0
  %1306 = vmatpush1.msra.mxu0 0.0
  %1307 = vmatprep.subr.mxu0 0.0
  %1308 = vmatpush1.msra.mxu0 0.0
  %1309 = vmatprep.subr.mxu0 0.0
  %1310 = vmatpush1.msra.mxu0 0.0
  %1311 = vmatprep.subr.mxu0 0.0
  %1312 = vmatpush1.msra.mxu0 0.0
  %1313 = vmatprep.subr.mxu0 0.0
  %1314 = vmatpush1.msra.mxu0 0.0
  %1315 = vmatprep.subr.mxu0 0.0
  %1316 = vmatpush1.msra.mxu0 0.0
  %1317 = vmatprep.subr.mxu0 0.0
  %1318 = vmatpush1.msra.mxu0 0.0
  %1319 = vmatprep.subr.mxu0 0.0
  %1320 = vmatpush1.msra.mxu0 0.0
  %1321 = vmatprep.subr.mxu0 0.0
  %1322 = vmatpush1.msra.mxu0 0.0
  %1323 = vmatprep.subr.mxu0 0.0
  %1324 = vmatpush1.msra.mxu0 0.0
  %1325 = vmatprep.subr.mxu0 0.0
  %1326 = vmatpush1.msra.mxu0 0.0
  %1327 = vmatprep.subr.mxu0 0.0
  %1328 = vmatpush1.msra.mxu0 0.0
  %1329 = vmatprep.subr.mxu0 0.0
  %1330 = vmatpush1.msra.mxu0 0.0
  %1331 = vmatprep.subr.mxu0 0.0
  %1332 = vmatpush1.msra.mxu0 0.0
  %1333 = vmatprep.subr.mxu0 0.0
  %1334 = vmatpush1.msra.mxu0 0.0
  %1335 = vmatprep.subr.mxu0 0.0
  %1336 = vmatpush1.msra.mxu0 0.0
  %1337 = vmatprep.subr.mxu0 0.0
  %1338 = vmatpush1.msra.mxu0 0.0
  %1339 = vmatprep.subr.mxu0 0.0
  %1340 = vmatpush1.msra.mxu0 0.0
  %1341 = vmatprep.subr.mxu0 0.0
  %1342 = vmatpush1.msra.mxu0 0.0
  %1343 = vmatprep.subr.mxu0 0.0
  %1344 = vmatpush1.msra.mxu0 0.0
  %1345 = vmatprep.subr.mxu0 0.0
  %1346 = vmatpush1.msra.mxu0 0.0
  %1347 = vmatprep.subr.mxu0 0.0
  %1348 = vmatpush1.msra.mxu0 0.0
  %1349 = vmatprep.mubr.f32.mxu0 0.0
  %1350 = vmatmul.mubr.f32.gmra.mrb[0].mxu0 %v1283
  %v1351 = vpop.f32.mrb[0].mxu0
  %v1352 = vadd.f32 %v1281, %v1351
  %v1353 = vpop.f32.mrb[0].mxu0
  %1354 = vdwg.mxu0
  %v1355 = vtanh.pop %v1352
  %v1356 = vmul.f32 %v1355, 0.5
  %v1357 = vadd.f32 %v1356, 0.5
  %v1358 = vsel %vm34, %v1355, %v1357
  %v1359 = vmul.f32 %v1358, %v1270
  %1361 = vrot.lane.b32.xlu0 %v1358, 108
  %v1362 = vpop.permute.xlu0 %1361
  %v1364 = vmul.f32 %v1358, %v1362
  %1366 = vrot.lane.b32.xlu0 %v1364, 10
  %v1367 = vpop.permute.xlu0 %1366
  %v1369 = vadd.f32 %v1359, %v1367
  %v1370 = vtanh.pop %v1369
  %1372 = vrot.lane.b32.xlu0 %v1370, 20
  %v1373 = vpop.permute.xlu0 %1372
  %v1375 = vmul.f32 %v1358, %v1373
  %1377 = vrot.lane.b32.xlu0 %v1375, 98
  %v1378 = vpop.permute.xlu0 %1377
  %v1379 = vsel %vm54, %v1378, 0
  %1381 = vmatprep.subr.mxu0 0.0
  %1382 = vmatpush1.msra.mxu0 %v15
  %1383 = vmatprep.subr.mxu0 0.0
  %1384 = vmatpush1.msra.mxu0 %v989
  %1385 = vmatprep.subr.mxu0 0.0
  %1386 = vmatpush1.msra.mxu0 0.0
  %1387 = vmatprep.subr.mxu0 0.0
  %1388 = vmatpush1.msra.mxu0 0.0
  %1389 = vmatprep.subr.mxu0 0.0
  %1390 = vmatpush1.msra.mxu0 0.0
  %1391 = vmatprep.subr.mxu0 0.0
  %1392 = vmatpush1.msra.mxu0 0.0
  %1393 = vmatprep.subr.mxu0 0.0
  %1394 = vmatpush1.msra.mxu0 0.0
  %1395 = vmatprep.subr.mxu0 0.0
  %1396 = vmatpush1.msra.mxu0 0.0
  %1397 = vmatprep.subr.mxu0 0.0
  %1398 = vmatpush1.msra.mxu0 0.0
  %1399 = vmatprep.subr.mxu0 0.0
  %1400 = vmatpush1.msra.mxu0 0.0
  %1401 = vmatprep.subr.mxu0 0.0
  %1402 = vmatpush1.msra.mxu0 0.0
  %1403 = vmatprep.subr.mxu0 0.0
  %1404 = vmatpush1.msra.mxu0 0.0
  %1405 = vmatprep.subr.mxu0 0.0
  %1406 = vmatpush1.msra.mxu0 0.0
  %1407 = vmatprep.subr.mxu0 0.0
  %1408 = vmatpush1.msra.mxu0 0.0
  %1409 = vmatprep.subr.mxu0 0.0
  %1410 = vmatpush1.msra.mxu0 0.0
  %1411 = vmatprep.subr.mxu0 0.0
  %1412 = vmatpush1.msra.mxu0 0.0
  %1413 = vmatprep.subr.mxu0 0.0
  %1414 = vmatpush1.msra.mxu0 0.0
  %1415 = vmatprep.subr.mxu0 0.0
  %1416 = vmatpush1.msra.mxu0 0.0
  %1417 = vmatprep.subr.mxu0 0.0
  %1418 = vmatpush1.msra.mxu0 0.0
  %1419 = vmatprep.subr.mxu0 0.0
  %1420 = vmatpush1.msra.mxu0 0.0
  %1421 = vmatprep.subr.mxu0 0.0
  %1422 = vmatpush1.msra.mxu0 0.0
  %1423 = vmatprep.subr.mxu0 0.0
  %1424 = vmatpush1.msra.mxu0 0.0
  %1425 = vmatprep.subr.mxu0 0.0
  %1426 = vmatpush1.msra.mxu0 0.0
  %1427 = vmatprep.subr.mxu0 0.0
  %1428 = vmatpush1.msra.mxu0 0.0
  %1429 = vmatprep.subr.mxu0 0.0
  %1430 = vmatpush1.msra.mxu0 0.0
  %1431 = vmatprep.subr.mxu0 0.0
  %1432 = vmatpush1.msra.mxu0 0.0
  %1433 = vmatprep.subr.mxu0 0.0
  %1434 = vmatpush1.msra.mxu0 0.0
  %1435 = vmatprep.subr.mxu0 0.0
  %1436 = vmatpush1.msra.mxu0 0.0
  %1437 = vmatprep.subr.mxu0 0.0
  %1438 = vmatpush1.msra.mxu0 0.0
  %1439 = vmatprep.subr.mxu0 0.0
  %1440 = vmatpush1.msra.mxu0 0.0
  %1441 = vmatprep.subr.mxu0 0.0
  %1442 = vmatpush1.msra.mxu0 0.0
  %1443 = vmatprep.subr.mxu0 0.0
  %1444 = vmatpush1.msra.mxu0 0.0
  %1445 = vmatprep.mubr.f32.mxu0 0.0
  %1446 = vmatmul.mubr.f32.gmra.mrb[0].mxu0 %v1379
  %v1447 = vpop.f32.mrb[0].mxu0
  %v1448 = vadd.f32 %v983, %v1447
  %v1449 = vpop.f32.mrb[0].mxu0
  %1450 = vdwg.mxu0
  %v1451 = vtanh.pop %v1448
  %v1452 = vmul.f32 %v1451, 0.5
  %v1453 = vadd.f32 %v1452, 0.5
  %v1454 = vsel %vm34, %v1451, %v1453
  %v1455 = vmul.f32 %v1454, %v1369
  %1457 = vrot.lane.b32.xlu0 %v1454, 108
  %v1458 = vpop.permute.xlu0 %1457
  %v1460 = vmul.f32 %v1454, %v1458
  %1462 = vrot.lane.b32.xlu0 %v1460, 10
  %v1463 = vpop.permute.xlu0 %1462
  %v1465 = vadd.f32 %v1455, %v1463
  %v1466 = vtanh.pop %v1465
  %1468 = vrot.lane.b32.xlu0 %v1466, 20
  %v1469 = vpop.permute.xlu0 %1468
  %v1471 = vmul.f32 %v1454, %v1469
  %1473 = vrot.lane.b32.xlu0 %v1471, 98
  %v1474 = vpop.permute.xlu0 %1473
  %v1476 = vrot.slane %v983, 4
  %v1478 = vsel %vm54, %v1474, 0
  %1480 = vmatprep.subr.mxu0 0.0
  %1481 = vmatpush1.msra.mxu0 %v15
  %1482 = vmatprep.subr.mxu0 0.0
  %1483 = vmatpush1.msra.mxu0 %v989
  %1484 = vmatprep.subr.mxu0 0.0
  %1485 = vmatpush1.msra.mxu0 0.0
  %1486 = vmatprep.subr.mxu0 0.0
  %1487 = vmatpush1.msra.mxu0 0.0
  %1488 = vmatprep.subr.mxu0 0.0
  %1489 = vmatpush1.msra.mxu0 0.0
  %1490 = vmatprep.subr.mxu0 0.0
  %1491 = vmatpush1.msra.mxu0 0.0
  %1492 = vmatprep.subr.mxu0 0.0
  %1493 = vmatpush1.msra.mxu0 0.0
  %1494 = vmatprep.subr.mxu0 0.0
  %1495 = vmatpush1.msra.mxu0 0.0
  %1496 = vmatprep.subr.mxu0 0.0
  %1497 = vmatpush1.msra.mxu0 0.0
  %1498 = vmatprep.subr.mxu0 0.0
  %1499 = vmatpush1.msra.mxu0 0.0
  %1500 = vmatprep.subr.mxu0 0.0
  %1501 = vmatpush1.msra.mxu0 0.0
  %1502 = vmatprep.subr.mxu0 0.0
  %1503 = vmatpush1.msra.mxu0 0.0
  %1504 = vmatprep.subr.mxu0 0.0
  %1505 = vmatpush1.msra.mxu0 0.0
  %1506 = vmatprep.subr.mxu0 0.0
  %1507 = vmatpush1.msra.mxu0 0.0
  %1508 = vmatprep.subr.mxu0 0.0
  %1509 = vmatpush1.msra.mxu0 0.0
  %1510 = vmatprep.subr.mxu0 0.0
  %1511 = vmatpush1.msra.mxu0 0.0
  %1512 = vmatprep.subr.mxu0 0.0
  %1513 = vmatpush1.msra.mxu0 0.0
  %1514 = vmatprep.subr.mxu0 0.0
  %1515 = vmatpush1.msra.mxu0 0.0
  %1516 = vmatprep.subr.mxu0 0.0
  %1517 = vmatpush1.msra.mxu0 0.0
  %1518 = vmatprep.subr.mxu0 0.0
  %1519 = vmatpush1.msra.mxu0 0.0
  %1520 = vmatprep.subr.mxu0 0.0
  %1521 = vmatpush1.msra.mxu0 0.0
  %1522 = vmatprep.subr.mxu0 0.0
  %1523 = vmatpush1.msra.mxu0 0.0
  %1524 = vmatprep.subr.mxu0 0.0
  %1525 = vmatpush1.msra.mxu0 0.0
  %1526 = vmatprep.subr.mxu0 0.0
  %1527 = vmatpush1.msra.mxu0 0.0
  %1528 = vmatprep.subr.mxu0 0.0
  %1529 = vmatpush1.msra.mxu0 0.0
  %1530 = vmatprep.subr.mxu0 0.0
  %1531 = vmatpush1.msra.mxu0 0.0
  %1532 = vmatprep.subr.mxu0 0.0
  %1533 = vmatpush1.msra.mxu0 0.0
  %1534 = vmatprep.subr.mxu0 0.0
  %1535 = vmatpush1.msra.mxu0 0.0
  %1536 = vmatprep.subr.mxu0 0.0
  %1537 = vmatpush1.msra.mxu0 0.0
  %1538 = vmatprep.subr.mxu0 0.0
  %1539 = vmatpush1.msra.mxu0 0.0
  %1540 = vmatprep.subr.mxu0 0.0
  %1541 = vmatpush1.msra.mxu0 0.0
  %1542 = vmatprep.subr.mxu0 0.0
  %1543 = vmatpush1.msra.mxu0 0.0
  %1544 = vmatprep.mubr.f32.mxu0 0.0
  %1545 = vmatmul.mubr.f32.gmra.mrb[0].mxu0 %v1478
  %v1546 = vpop.f32.mrb[0].mxu0
  %v1547 = vadd.f32 %v1476, %v1546
  %v1548 = vpop.f32.mrb[0].mxu0
  %1549 = vdwg.mxu0
  %v1550 = vtanh.pop %v1547
  %v1551 = vmul.f32 %v1550, 0.5
  %v1552 = vadd.f32 %v1551, 0.5
  %v1553 = vsel %vm34, %v1550, %v1552
  %v1554 = vmul.f32 %v1553, %v1465
  %1556 = vrot.lane.b32.xlu0 %v1553, 108
  %v1557 = vpop.permute.xlu0 %1556
  %v1559 = vmul.f32 %v1553, %v1557
  %1561 = vrot.lane.b32.xlu0 %v1559, 10
  %v1562 = vpop.permute.xlu0 %1561
  %v1564 = vadd.f32 %v1554, %v1562
  %v1565 = vtanh.pop %v1564
  %1567 = vrot.lane.b32.xlu0 %v1565, 20
  %v1568 = vpop.permute.xlu0 %1567
  %v1570 = vmul.f32 %v1553, %v1568
  %1572 = vrot.lane.b32.xlu0 %v1570, 98
  %v1573 = vpop.permute.xlu0 %1572
  %v1574 = vsel %vm54, %v1573, 0
  %1576 = vmatprep.subr.mxu0 0.0
  %1577 = vmatpush1.msra.mxu0 %v15
  %1578 = vmatprep.subr.mxu0 0.0
  %1579 = vmatpush1.msra.mxu0 %v989
  %1580 = vmatprep.subr.mxu0 0.0
  %1581 = vmatpush1.msra.mxu0 0.0
  %1582 = vmatprep.subr.mxu0 0.0
  %1583 = vmatpush1.msra.mxu0 0.0
  %1584 = vmatprep.subr.mxu0 0.0
  %1585 = vmatpush1.msra.mxu0 0.0
  %1586 = vmatprep.subr.mxu0 0.0
  %1587 = vmatpush1.msra.mxu0 0.0
  %1588 = vmatprep.subr.mxu0 0.0
  %1589 = vmatpush1.msra.mxu0 0.0
  %1590 = vmatprep.subr.mxu0 0.0
  %1591 = vmatpush1.msra.mxu0 0.0
  %1592 = vmatprep.subr.mxu0 0.0
  %1593 = vmatpush1.msra.mxu0 0.0
  %1594 = vmatprep.subr.mxu0 0.0
  %1595 = vmatpush1.msra.mxu0 0.0
  %1596 = vmatprep.subr.mxu0 0.0
  %1597 = vmatpush1.msra.mxu0 0.0
  %1598 = vmatprep.subr.mxu0 0.0
  %1599 = vmatpush1.msra.mxu0 0.0
  %1600 = vmatprep.subr.mxu0 0.0
  %1601 = vmatpush1.msra.mxu0 0.0
  %1602 = vmatprep.subr.mxu0 0.0
  %1603 = vmatpush1.msra.mxu0 0.0
  %1604 = vmatprep.subr.mxu0 0.0
  %1605 = vmatpush1.msra.mxu0 0.0
  %1606 = vmatprep.subr.mxu0 0.0
  %1607 = vmatpush1.msra.mxu0 0.0
  %1608 = vmatprep.subr.mxu0 0.0
  %1609 = vmatpush1.msra.mxu0 0.0
  %1610 = vmatprep.subr.mxu0 0.0
  %1611 = vmatpush1.msra.mxu0 0.0
  %1612 = vmatprep.subr.mxu0 0.0
  %1613 = vmatpush1.msra.mxu0 0.0
  %1614 = vmatprep.subr.mxu0 0.0
  %1615 = vmatpush1.msra.mxu0 0.0
  %1616 = vmatprep.subr.mxu0 0.0
  %1617 = vmatpush1.msra.mxu0 0.0
  %1618 = vmatprep.subr.mxu0 0.0
  %1619 = vmatpush1.msra.mxu0 0.0
  %1620 = vmatprep.subr.mxu0 0.0
  %1621 = vmatpush1.msra.mxu0 0.0
  %1622 = vmatprep.subr.mxu0 0.0
  %1623 = vmatpush1.msra.mxu0 0.0
  %1624 = vmatprep.subr.mxu0 0.0
  %1625 = vmatpush1.msra.mxu0 0.0
  %1626 = vmatprep.subr.mxu0 0.0
  %1627 = vmatpush1.msra.mxu0 0.0
  %1628 = vmatprep.subr.mxu0 0.0
  %1629 = vmatpush1.msra.mxu0 0.0
  %1630 = vmatprep.subr.mxu0 0.0
  %1631 = vmatpush1.msra.mxu0 0.0
  %1632 = vmatprep.subr.mxu0 0.0
  %1633 = vmatpush1.msra.mxu0 0.0
  %1634 = vmatprep.subr.mxu0 0.0
  %1635 = vmatpush1.msra.mxu0 0.0
  %1636 = vmatprep.subr.mxu0 0.0
  %1637 = vmatpush1.msra.mxu0 0.0
  %1638 = vmatprep.subr.mxu0 0.0
  %1639 = vmatpush1.msra.mxu0 0.0
  %1640 = vmatprep.mubr.f32.mxu0 0.0
  %1641 = vmatmul.mubr.f32.gmra.mrb[0].mxu0 %v1574
  %v1642 = vpop.f32.mrb[0].mxu0
  %v1643 = vadd.f32 %v987, %v1642
  %v1644 = vpop.f32.mrb[0].mxu0
  %1645 = vdwg.mxu0
  %v1646 = vtanh.pop %v1643
  %v1647 = vmul.f32 %v1646, 0.5
  %v1648 = vadd.f32 %v1647, 0.5
  %v1649 = vsel %vm34, %v1646, %v1648
  %v1650 = vmul.f32 %v1649, %v1564
  %1652 = vrot.lane.b32.xlu0 %v1649, 108
  %v1653 = vpop.permute.xlu0 %1652
  %v1655 = vmul.f32 %v1649, %v1653
  %1657 = vrot.lane.b32.xlu0 %v1655, 10
  %v1658 = vpop.permute.xlu0 %1657
  %v1660 = vadd.f32 %v1650, %v1658
  %v1661 = vtanh.pop %v1660
  %1663 = vrot.lane.b32.xlu0 %v1661, 20
  %v1664 = vpop.permute.xlu0 %1663
  %v1666 = vmul.f32 %v1649, %v1664
  %1668 = vrot.lane.b32.xlu0 %v1666, 98
  %v1669 = vpop.permute.xlu0 %1668
  %v1671 = vrot.slane %v987, 4
  %v1673 = vsel %vm54, %v1669, 0
  %1675 = vmatprep.subr.mxu0 0.0
  %1676 = vmatpush1.msra.mxu0 %v15
  %1677 = vmatprep.subr.mxu0 0.0
  %1678 = vmatpush1.msra.mxu0 %v989
  %1679 = vmatprep.subr.mxu0 0.0
  %1680 = vmatpush1.msra.mxu0 0.0
  %1681 = vmatprep.subr.mxu0 0.0
  %1682 = vmatpush1.msra.mxu0 0.0
  %1683 = vmatprep.subr.mxu0 0.0
  %1684 = vmatpush1.msra.mxu0 0.0
  %1685 = vmatprep.subr.mxu0 0.0
  %1686 = vmatpush1.msra.mxu0 0.0
  %1687 = vmatprep.subr.mxu0 0.0
  %1688 = vmatpush1.msra.mxu0 0.0
  %1689 = vmatprep.subr.mxu0 0.0
  %1690 = vmatpush1.msra.mxu0 0.0
  %1691 = vmatprep.subr.mxu0 0.0
  %1692 = vmatpush1.msra.mxu0 0.0
  %1693 = vmatprep.subr.mxu0 0.0
  %1694 = vmatpush1.msra.mxu0 0.0
  %1695 = vmatprep.subr.mxu0 0.0
  %1696 = vmatpush1.msra.mxu0 0.0
  %1697 = vmatprep.subr.mxu0 0.0
  %1698 = vmatpush1.msra.mxu0 0.0
  %1699 = vmatprep.subr.mxu0 0.0
  %1700 = vmatpush1.msra.mxu0 0.0
  %1701 = vmatprep.subr.mxu0 0.0
  %1702 = vmatpush1.msra.mxu0 0.0
  %1703 = vmatprep.subr.mxu0 0.0
  %1704 = vmatpush1.msra.mxu0 0.0
  %1705 = vmatprep.subr.mxu0 0.0
  %1706 = vmatpush1.msra.mxu0 0.0
  %1707 = vmatprep.subr.mxu0 0.0
  %1708 = vmatpush1.msra.mxu0 0.0
  %1709 = vmatprep.subr.mxu0 0.0
  %1710 = vmatpush1.msra.mxu0 0.0
  %1711 = vmatprep.subr.mxu0 0.0
  %1712 = vmatpush1.msra.mxu0 0.0
  %1713 = vmatprep.subr.mxu0 0.0
  %1714 = vmatpush1.msra.mxu0 0.0
  %1715 = vmatprep.subr.mxu0 0.0
  %1716 = vmatpush1.msra.mxu0 0.0
  %1717 = vmatprep.subr.mxu0 0.0
  %1718 = vmatpush1.msra.mxu0 0.0
  %1719 = vmatprep.subr.mxu0 0.0
  %1720 = vmatpush1.msra.mxu0 0.0
  %1721 = vmatprep.subr.mxu0 0.0
  %1722 = vmatpush1.msra.mxu0 0.0
  %1723 = vmatprep.subr.mxu0 0.0
  %1724 = vmatpush1.msra.mxu0 0.0
  %1725 = vmatprep.subr.mxu0 0.0
  %1726 = vmatpush1.msra.mxu0 0.0
  %1727 = vmatprep.subr.mxu0 0.0
  %1728 = vmatpush1.msra.mxu0 0.0
  %1729 = vmatprep.subr.mxu0 0.0
  %1730 = vmatpush1.msra.mxu0 0.0
  %1731 = vmatprep.subr.mxu0 0.0
  %1732 = vmatpush1.msra.mxu0 0.0
  %1733 = vmatprep.subr.mxu0 0.0
  %1734 = vmatpush1.msra.mxu0 0.0
  %1735 = vmatprep.subr.mxu0 0.0
  %1736 = vmatpush1.msra.mxu0 0.0
  %1737 = vmatprep.subr.mxu0 0.0
  %1738 = vmatpush1.msra.mxu0 0.0
  %1739 = vmatprep.mubr.f32.mxu0 0.0
  %1740 = vmatmul.mubr.f32.gmra.mrb[0].mxu0 %v1673
  %v1741 = vpop.f32.mrb[0].mxu0
  %v1742 = vadd.f32 %v1671, %v1741
  %v1743 = vpop.f32.mrb[0].mxu0
  %1744 = vdwg.mxu0
  %v1745 = vtanh.pop %v1742
  %v1746 = vmul.f32 %v1745, 0.5
  %v1747 = vadd.f32 %v1746, 0.5
  %v1748 = vsel %vm34, %v1745, %v1747
  %v1749 = vmul.f32 %v1748, %v1660
  %1751 = vrot.lane.b32.xlu0 %v1748, 108
  %v1752 = vpop.permute.xlu0 %1751
  %v1754 = vmul.f32 %v1748, %v1752
  %1756 = vrot.lane.b32.xlu0 %v1754, 10
  %v1757 = vpop.permute.xlu0 %1756
  %v1759 = vadd.f32 %v1749, %v1757
  %v1760 = vtanh.pop %v1759
  %1762 = vrot.lane.b32.xlu0 %v1760, 20
  %v1763 = vpop.permute.xlu0 %1762
  %v1765 = vmul.f32 %v1748, %v1763
  %v1766 = vlaneseq
  %v1767 = vshrl.u32 %v1766, 7
  %v1768 = vsub.s32 0, %v1767
  %v1769 = vrot.slane %v20, %v1768
  %1771 = vrot.lane.b32.xlu0 %v1765, 98
  %v1772 = vpop.permute.xlu0 %1771
  %v1773 = vsel %vm54, %v1772, 0
  %v1776 = vsel %vm58, %v19, 0
  %1778 = vmatprep.subr.mxu0 0.0
  %1779 = vmatpush1.msra.mxu0 %v18
  %1780 = vmatprep.subr.mxu0 0.0
  %1781 = vmatpush1.msra.mxu0 %v1776
  %1782 = vmatprep.subr.mxu0 0.0
  %1783 = vmatpush1.msra.mxu0 0.0
  %1784 = vmatprep.subr.mxu0 0.0
  %1785 = vmatpush1.msra.mxu0 0.0
  %1786 = vmatprep.subr.mxu0 0.0
  %1787 = vmatpush1.msra.mxu0 0.0
  %1788 = vmatprep.subr.mxu0 0.0
  %1789 = vmatpush1.msra.mxu0 0.0
  %1790 = vmatprep.subr.mxu0 0.0
  %1791 = vmatpush1.msra.mxu0 0.0
  %1792 = vmatprep.subr.mxu0 0.0
  %1793 = vmatpush1.msra.mxu0 0.0
  %1794 = vmatprep.subr.mxu0 0.0
  %1795 = vmatpush1.msra.mxu0 0.0
  %1796 = vmatprep.subr.mxu0 0.0
  %1797 = vmatpush1.msra.mxu0 0.0
  %1798 = vmatprep.subr.mxu0 0.0
  %1799 = vmatpush1.msra.mxu0 0.0
  %1800 = vmatprep.subr.mxu0 0.0
  %1801 = vmatpush1.msra.mxu0 0.0
  %1802 = vmatprep.subr.mxu0 0.0
  %1803 = vmatpush1.msra.mxu0 0.0
  %1804 = vmatprep.subr.mxu0 0.0
  %1805 = vmatpush1.msra.mxu0 0.0
  %1806 = vmatprep.subr.mxu0 0.0
  %1807 = vmatpush1.msra.mxu0 0.0
  %1808 = vmatprep.subr.mxu0 0.0
  %1809 = vmatpush1.msra.mxu0 0.0
  %1810 = vmatprep.subr.mxu0 0.0
  %1811 = vmatpush1.msra.mxu0 0.0
  %1812 = vmatprep.subr.mxu0 0.0
  %1813 = vmatpush1.msra.mxu0 0.0
  %1814 = vmatprep.subr.mxu0 0.0
  %1815 = vmatpush1.msra.mxu0 0.0
  %1816 = vmatprep.subr.mxu0 0.0
  %1817 = vmatpush1.msra.mxu0 0.0
  %1818 = vmatprep.subr.mxu0 0.0
  %1819 = vmatpush1.msra.mxu0 0.0
  %1820 = vmatprep.subr.mxu0 0.0
  %1821 = vmatpush1.msra.mxu0 0.0
  %1822 = vmatprep.subr.mxu0 0.0
  %1823 = vmatpush1.msra.mxu0 0.0
  %1824 = vmatprep.subr.mxu0 0.0
  %1825 = vmatpush1.msra.mxu0 0.0
  %1826 = vmatprep.subr.mxu0 0.0
  %1827 = vmatpush1.msra.mxu0 0.0
  %1828 = vmatprep.subr.mxu0 0.0
  %1829 = vmatpush1.msra.mxu0 0.0
  %1830 = vmatprep.subr.mxu0 0.0
  %1831 = vmatpush1.msra.mxu0 0.0
  %1832 = vmatprep.subr.mxu0 0.0
  %1833 = vmatpush1.msra.mxu0 0.0
  %1834 = vmatprep.subr.mxu0 0.0
  %1835 = vmatpush1.msra.mxu0 0.0
  %1836 = vmatprep.subr.mxu0 0.0
  %1837 = vmatpush1.msra.mxu0 0.0
  %1838 = vmatprep.subr.mxu0 0.0
  %1839 = vmatpush1.msra.mxu0 0.0
  %1840 = vmatprep.subr.mxu0 0.0
  %1841 = vmatpush1.msra.mxu0 0.0
  %1842 = vmatprep.mubr.f32.mxu0 0.0
  %1843 = vmatmul.mubr.f32.gmra.mrb[0].mxu0 %v1773
  %v1844 = vpop.f32.mrb[0].mxu0
  %v1845 = vadd.f32 %v1769, %v1844
  %v1846 = vpop.f32.mrb[0].mxu0
  %1847 = vdwg.mxu0
  %v1848 = vmax.f32 %v1845, 0.0
  %v1849 = vlaneseq
  %v1850 = vshrl.u32 %v1849, 7
  %v1851 = vsub.s32 0, %v1850
  %v1852 = vrot.slane %v29, %v1851
  %vm1853 = vcmask 523264
  %v1855 = vsel %vm1853, %v1848, 0
  %1857 = vmatprep.subr.mxu0 0.0
  %1858 = vmatpush1.msra.mxu0 %v21
  %1859 = vmatprep.subr.mxu0 0.0
  %1860 = vmatpush1.msra.mxu0 %v22
  %1861 = vmatprep.subr.mxu0 0.0
  %1862 = vmatpush1.msra.mxu0 %v23
  %1863 = vmatprep.subr.mxu0 0.0
  %1864 = vmatpush1.msra.mxu0 %v24
  %1865 = vmatprep.subr.mxu0 0.0
  %1866 = vmatpush1.msra.mxu0 %v25
  %1867 = vmatprep.subr.mxu0 0.0
  %1868 = vmatpush1.msra.mxu0 %v26
  %1869 = vmatprep.subr.mxu0 0.0
  %1870 = vmatpush1.msra.mxu0 %v27
  %1871 = vmatprep.subr.mxu0 0.0
  %1872 = vmatpush1.msra.mxu0 %v28
  %1873 = vmatprep.subr.mxu0 0.0
  %1874 = vmatpush1.msra.mxu0 0.0
  %1875 = vmatprep.subr.mxu0 0.0
  %1876 = vmatpush1.msra.mxu0 0.0
  %1877 = vmatprep.subr.mxu0 0.0
  %1878 = vmatpush1.msra.mxu0 0.0
  %1879 = vmatprep.subr.mxu0 0.0
  %1880 = vmatpush1.msra.mxu0 0.0
  %1881 = vmatprep.subr.mxu0 0.0
  %1882 = vmatpush1.msra.mxu0 0.0
  %1883 = vmatprep.subr.mxu0 0.0
  %1884 = vmatpush1.msra.mxu0 0.0
  %1885 = vmatprep.subr.mxu0 0.0
  %1886 = vmatpush1.msra.mxu0 0.0
  %1887 = vmatprep.subr.mxu0 0.0
  %1888 = vmatpush1.msra.mxu0 0.0
  %1889 = vmatprep.subr.mxu0 0.0
  %1890 = vmatpush1.msra.mxu0 0.0
  %1891 = vmatprep.subr.mxu0 0.0
  %1892 = vmatpush1.msra.mxu0 0.0
  %1893 = vmatprep.subr.mxu0 0.0
  %1894 = vmatpush1.msra.mxu0 0.0
  %1895 = vmatprep.subr.mxu0 0.0
  %1896 = vmatpush1.msra.mxu0 0.0
  %1897 = vmatprep.subr.mxu0 0.0
  %1898 = vmatpush1.msra.mxu0 0.0
  %1899 = vmatprep.subr.mxu0 0.0
  %1900 = vmatpush1.msra.mxu0 0.0
  %1901 = vmatprep.subr.mxu0 0.0
  %1902 = vmatpush1.msra.mxu0 0.0
  %1903 = vmatprep.subr.mxu0 0.0
  %1904 = vmatpush1.msra.mxu0 0.0
  %1905 = vmatprep.subr.mxu0 0.0
  %1906 = vmatpush1.msra.mxu0 0.0
  %1907 = vmatprep.subr.mxu0 0.0
  %1908 = vmatpush1.msra.mxu0 0.0
  %1909 = vmatprep.subr.mxu0 0.0
  %1910 = vmatpush1.msra.mxu0 0.0
  %1911 = vmatprep.subr.mxu0 0.0
  %1912 = vmatpush1.msra.mxu0 0.0
  %1913 = vmatprep.subr.mxu0 0.0
  %1914 = vmatpush1.msra.mxu0 0.0
  %1915 = vmatprep.subr.mxu0 0.0
  %1916 = vmatpush1.msra.mxu0 0.0
  %1917 = vmatprep.subr.mxu0 0.0
  %1918 = vmatpush1.msra.mxu0 0.0
  %1919 = vmatprep.subr.mxu0 0.0
  %1920 = vmatpush1.msra.mxu0 0.0
  %1921 = vmatprep.mubr.f32.mxu0 0.0
  %1922 = vmatmul.mubr.f32.gmra.mrb[0].mxu0 %v1855
  %v1923 = vpop.f32.mrb[0].mxu0
  %v1924 = vadd.f32 %v1852, %v1923
  %v1925 = vpop.f32.mrb[0].mxu0
  %1926 = vdwg.mxu0
  %vm1927 = vcmask 11264
  %1928 = vst.msk [vmem:[%s2] sm:$0xf] %vm1927, %v1924
  // Predicated region
  $region10: #{rnn_forward.1} parent=0 // pred_check
    _
  $region11: #{rnn_forward.1} parent=0 // pred_check_branch
    %1930 = sbr.rel (0) target = $region13
  $region12: #{rnn_forward.1} parent=0 // pred_region
    _
  $region13: #{rnn_forward.1} parent=0 // pred_fallthru
    _
  // Predicated region
  $region14: #{rnn_forward.1} parent=0 // pred_check
    _
  $region15: #{rnn_forward.1} parent=0 // pred_check_branch
    %1932 = sbr.rel (0) target = $region17
  $region16: #{rnn_forward.1} parent=0 // pred_region
    _
  $region17: #{rnn_forward.1} parent=0 // pred_fallthru
    _

</llo_original>
